<compile_context>
chip_gen: v5e
topology: v5e:2x2
jax: 0.10.0
libtpu: 0.0.40
codegen_flags: <defaults>
</compile_context>

<pallas_src>
import math

import jax
import jax.numpy as jnp
from jax.experimental import pallas as pl
from jax.experimental.pallas import tpu as pltpu


def _round_up(n: int, m: int) -> int:
    return ((n + m - 1) // m) * m


def init_layer_att2_params(wq, bq, wk, bk, wv, bv):
    """One-time parameter fusion (init-time cost, NOT paid per forward call).

    w*: (inSize, outSize) stored transposed relative to torch Linear, b*: (1, outSize).
    Returns the fused (inSize, 3*P) weight and (1, 3*P) bias with the 1/sqrt(outSize)
    scale folded into the Q segment. P = outSize rounded up to 128 lanes; the zero
    padding sits in the Q.K contraction dim (contributes exactly 0) and in unused V
    columns (never read), so the math is bit-identical to the unpadded version.
    """
    in_size, out_size = wq.shape
    p = _round_up(out_size, 128)
    pad = p - out_size
    norm = 1.0 / math.sqrt(out_size)

    pad_cols = lambda a: jnp.pad(a, ((0, 0), (0, pad)))
    w_qkv = jnp.concatenate(
        [pad_cols(wq * norm), pad_cols(wk), pad_cols(wv)], axis=1)
    b_qkv = jnp.concatenate(
        [pad_cols(bq * norm), pad_cols(bk), pad_cols(bv)], axis=1)
    return {
        "w_qkv": w_qkv,
        "b_qkv": b_qkv,
        "in_size": in_size,
        "out_size": out_size,
        "p": p,
    }


def _make_kernel(n: int, p: int, out_size: int):
    """n = tokens per sample, p = lane-aligned Q/K/V segment width."""

    def layeratt2_kernel(x_ref, w_ref, b_ref, z_ref):
        tb, _, in_size = x_ref.shape

        # Fused Q/K/V projection: ONE MXU matmul with M = tb*n rows (batch folded
        # into rows). The (tb, n, .) <-> (tb*n, .) reshapes keep the trailing dim
        # fixed and split/merge along sublane-tile boundaries when n % 8 == 0.
        x2 = x_ref[...].reshape(tb * n, in_size)
        qkv = jnp.dot(x2, w_ref[...], preferred_element_type=jnp.float32)
        qkv = (qkv + b_ref[...]).reshape(tb, n, 3 * p)

        # 128-lane-aligned static slices; norm already folded into the Q segment.
        q = qkv[..., 0:p]
        k = qkv[..., p:2 * p]
        v = qkv[..., 2 * p:2 * p + out_size]

        # Per-sample scores: contract the feature dim of Q with K (transpose
        # absorbed into the contraction — no XLU transpose). Zero lane padding
        # lives in this contraction dim, so it contributes exactly 0.
        s = jnp.einsum("bqd,bkd->bqk", q, k, preferred_element_type=jnp.float32)

        # Row-wise softmax over the key dim (== torch dim=1 of the (N, N) scores).
        s_max = jnp.max(s, axis=-1, keepdims=True)
        e = jnp.exp(s - s_max)
        denom = jnp.sum(e, axis=-1, keepdims=True)
        alpha = e * pl.reciprocal(denom, approx=False)

        # Weighted sum of values, stored directly at the logical output width.
        z = jnp.einsum("bqk,bkd->bqd", alpha, v, preferred_element_type=jnp.float32)
        z_ref[...] = z.astype(z_ref.dtype)

    return layeratt2_kernel


def _pick_tb(b: int, n: int, target_rows: int = 256) -> int:
    """Samples per grid step: aim for >=256 projection rows (fills a v6e/v7x MXU
    pass; >=2 passes on v5e), clipped to b and forced to divide b exactly."""
    tb = max(1, min(b, -(-target_rows // n)))
    while b % tb != 0:
        tb -= 1
    return tb


def layer_att2(params, x):
    """Apply LayerAtt2.

    x: (N, inSize) for the original single-sample forward, or (B, N, inSize) for a
    batch of independent samples (each attends only within itself).
    Returns (N, outSize) or (B, N, outSize) respectively.
    """
    w_qkv = params["w_qkv"]
    b_qkv = params["b_qkv"]
    out_size = params["out_size"]
    p = params["p"]

    squeeze = x.ndim == 2
    if squeeze:
        x = x[None]
    b, n, in_size = x.shape

    tb = _pick_tb(b, n)
    grid = (b // tb,)

    out = pl.pallas_call(
        _make_kernel(n, p, out_size),
        out_shape=jax.ShapeDtypeStruct((b, n, out_size), x.dtype),
        grid_spec=pltpu.PrefetchScalarGridSpec(
            num_scalar_prefetch=0,
            grid=grid,
            in_specs=[
                # x streams per batch step.
                pl.BlockSpec((tb, n, in_size), lambda i: (i, 0, 0)),
                # Fused weights / bias stay VMEM-resident across all batch steps.
                pl.BlockSpec(w_qkv.shape, lambda i: (0, 0)),
                pl.BlockSpec(b_qkv.shape, lambda i: (0, 0)),
            ],
            out_specs=pl.BlockSpec((tb, n, out_size), lambda i: (i, 0, 0)),
        ),
        compiler_params=pltpu.CompilerParams(
            dimension_semantics=("parallel",)),  # both TCs on v7x
    )(x, w_qkv, b_qkv)

    return out[0] if squeeze else out


def layer_att2_ref(x, wq, bq, wk, bk, wv, bv):
    """Pure-JAX reference for one (N, inSize) sample (mirrors the torch forward)."""
    out_size = wq.shape[1]
    q = x @ wq + bq
    k = x @ wk + bk
    v = x @ wv + bv
    s = (q @ k.T) * (1.0 / math.sqrt(out_size))
    alpha = jax.nn.softmax(s, axis=1)
    return alpha @ v


if __name__ == "__main__":
    in_size, out_size, n, batch = 32, 32, 8, 64

    key = jax.random.PRNGKey(0)
    kx, kq, kbq, kk, kbk, kv, kbv = jax.random.split(key, 7)

    # Deterministic synthetic parameters (torch Linear-like uniform init scale).
    bound = 1.0 / math.sqrt(in_size)
    x = jax.random.normal(kx, (batch, n, in_size), dtype=jnp.float32)
    wq = jax.random.uniform(kq, (in_size, out_size), jnp.float32, -bound, bound)
    bq = jax.random.uniform(kbq, (1, out_size), jnp.float32, -bound, bound)
    wk = jax.random.uniform(kk, (in_size, out_size), jnp.float32, -bound, bound)
    bk = jax.random.uniform(kbk, (1, out_size), jnp.float32, -bound, bound)
    wv = jax.random.uniform(kv, (in_size, out_size), jnp.float32, -bound, bound)
    bv = jax.random.uniform(kbv, (1, out_size), jnp.float32, -bound, bound)

    # One-time parameter fusion (hoisted out of the per-call path).
    params = init_layer_att2_params(wq, bq, wk, bk, wv, bv)
    jax.block_until_ready((params["w_qkv"], params["b_qkv"]))

    # Batched forward: 64 independent samples in one pallas_call (grid over batch).
    z = layer_att2(params, x)
    jax.block_until_ready(z)

    z_ref = jax.vmap(lambda xb: layer_att2_ref(xb, wq, bq, wk, bk, wv, bv))(x)
    assert z.shape == (batch, n, out_size)
    assert jnp.allclose(z, z_ref, atol=1e-5, rtol=1e-5), "batched mismatch vs reference"

    # Original single-sample (N, inSize) forward path.
    z1 = layer_att2(params, x[0])
    jax.block_until_ready(z1)
    assert z1.shape == (n, out_size)
    assert jnp.allclose(z1, z_ref[0], atol=1e-5, rtol=1e-5), "single-sample mismatch"

    print("KERNEL_OK")
</pallas_src>

<mosaic_0001>
module attributes {stable_mosaic.version = 11 : i64} {
  func.func @layeratt2_kernel(%arg0: i32, %arg1: memref<32x8x32xf32, #tpu.memory_space<vmem>>, %arg2: memref<32x384xf32, #tpu.memory_space<vmem>>, %arg3: memref<1x384xf32, #tpu.memory_space<vmem>>, %arg4: memref<32x8x32xf32, #tpu.memory_space<vmem>>) attributes {dimension_semantics = [#tpu.dimension_semantics<parallel>], iteration_bounds = array<i64: 2>, scalar_prefetch = 0 : i64, scratch_operands = 0 : i64, tpu.core_type = #tpu.core_type<tc>, window_params = [{transform_indices = @transform_0, window_bounds = array<i64: 32, 8, 32>}, {pipeline_mode = #tpu.pipeline_mode<synchronous>, transform_indices = @transform_1, window_bounds = array<i64: 32, 384>}, {pipeline_mode = #tpu.pipeline_mode<synchronous>, transform_indices = @transform_2, window_bounds = array<i64: 1, 384>}, {transform_indices = @transform_3, window_bounds = array<i64: 32, 8, 32>}]} {
    %c0 = arith.constant 0 : index
    %c0_0 = arith.constant 0 : index
    %c0_1 = arith.constant 0 : index
    %0 = vector.load %arg1[%c0, %c0_0, %c0_1] : memref<32x8x32xf32, #tpu.memory_space<vmem>>, vector<32x8x32xf32>
    %1 = vector.shape_cast %0 : vector<32x8x32xf32> to vector<256x32xf32>
    %c0_2 = arith.constant 0 : index
    %c0_3 = arith.constant 0 : index
    %2 = vector.load %arg2[%c0_2, %c0_3] : memref<32x384xf32, #tpu.memory_space<vmem>>, vector<32x384xf32>
    %cst = arith.constant dense<0.000000e+00> : vector<256x384xf32>
    %3 = tpu.matmul %1, %2, %cst {dimension_numbers = #tpu.dot_dimension_numbers<[1], [0], [0], [1], [0, 0, 1, 1], [], []>} : vector<256x32xf32>, vector<32x384xf32>, vector<256x384xf32> -> vector<256x384xf32>
    %c0_4 = arith.constant 0 : index
    %c0_5 = arith.constant 0 : index
    %4 = vector.load %arg3[%c0_4, %c0_5] : memref<1x384xf32, #tpu.memory_space<vmem>>, vector<1x384xf32>
    %5 = vector.broadcast %4 : vector<1x384xf32> to vector<256x384xf32>
    %6 = arith.addf %3, %5 : vector<256x384xf32>
    %7 = vector.shape_cast %6 : vector<256x384xf32> to vector<32x8x384xf32>
    %8 = vector.extract_strided_slice %7 {offsets = [0, 0, 0], sizes = [32, 8, 128], strides = [1, 1, 1]} : vector<32x8x384xf32> to vector<32x8x128xf32>
    %9 = vector.extract_strided_slice %7 {offsets = [0, 0, 128], sizes = [32, 8, 128], strides = [1, 1, 1]} : vector<32x8x384xf32> to vector<32x8x128xf32>
    %10 = vector.extract_strided_slice %7 {offsets = [0, 0, 256], sizes = [32, 8, 32], strides = [1, 1, 1]} : vector<32x8x384xf32> to vector<32x8x32xf32>
    "tpu.trace_start"() <{level = 10 : i32, message = "bqd,bkd->bqk"}> : () -> ()
    %cst_6 = arith.constant dense<0.000000e+00> : vector<32x8x8xf32>
    %11 = tpu.matmul %8, %9, %cst_6 {dimension_numbers = #tpu.dot_dimension_numbers<[2], [2], [1], [1], [0, 0, 0, 1, 1, 1], [0], [0]>} : vector<32x8x128xf32>, vector<32x8x128xf32>, vector<32x8x8xf32> -> vector<32x8x8xf32>
    "tpu.trace_stop"() : () -> ()
    %cst_7 = arith.constant dense<0xFF800000> : vector<32x8xf32>
    %12 = vector.multi_reduction <maximumf>, %11, %cst_7 [2] : vector<32x8x8xf32> to vector<32x8xf32>
    %13 = vector.shape_cast %12 : vector<32x8xf32> to vector<32x8x1xf32>
    %14 = vector.broadcast %13 : vector<32x8x1xf32> to vector<32x8x8xf32>
    %15 = arith.subf %11, %14 : vector<32x8x8xf32>
    %16 = math.exp %15 : vector<32x8x8xf32>
    %cst_8 = arith.constant dense<0.000000e+00> : vector<32x8xf32>
    %17 = vector.multi_reduction <add>, %16, %cst_8 [2] : vector<32x8x8xf32> to vector<32x8xf32>
    %18 = vector.shape_cast %17 : vector<32x8xf32> to vector<32x8x1xf32>
    %19 = tpu.reciprocal %18 : vector<32x8x1xf32> -> vector<32x8x1xf32>
    %20 = vector.broadcast %19 : vector<32x8x1xf32> to vector<32x8x8xf32>
    %21 = arith.mulf %16, %20 : vector<32x8x8xf32>
    "tpu.trace_start"() <{level = 10 : i32, message = "bqk,bkd->bqd"}> : () -> ()
    %cst_9 = arith.constant dense<0.000000e+00> : vector<32x8x32xf32>
    %22 = tpu.matmul %21, %10, %cst_9 {dimension_numbers = #tpu.dot_dimension_numbers<[2], [1], [1], [2], [0, 0, 0, 1, 1, 2], [0], [0]>} : vector<32x8x8xf32>, vector<32x8x32xf32>, vector<32x8x32xf32> -> vector<32x8x32xf32>
    "tpu.trace_stop"() : () -> ()
    %c0_10 = arith.constant 0 : index
    %c0_11 = arith.constant 0 : index
    %c0_12 = arith.constant 0 : index
    %23 = vector.load %arg4[%c0_10, %c0_11, %c0_12] : memref<32x8x32xf32, #tpu.memory_space<vmem>>, vector<32x8x32xf32>
    tpu.vector_store %arg4[%c0_10, %c0_11, %c0_12], %22 {strides = array<i32>} : memref<32x8x32xf32, #tpu.memory_space<vmem>>, vector<32x8x32xf32>,
    return
  }
  func.func @transform_0(%arg0: i32) -> (i32, i32, i32) {
    %c0_i32 = arith.constant 0 : i32
    %c0_i32_0 = arith.constant 0 : i32
    %c0_i32_1 = arith.constant 0 : i32
    return %arg0, %c0_i32, %c0_i32_0 : i32, i32, i32
  }
  func.func @transform_1(%arg0: i32) -> (i32, i32) {
    %c0_i32 = arith.constant 0 : i32
    %c0_i32_0 = arith.constant 0 : i32
    %c0_i32_1 = arith.constant 0 : i32
    return %c0_i32, %c0_i32_0 : i32, i32
  }
  func.func @transform_2(%arg0: i32) -> (i32, i32) {
    %c0_i32 = arith.constant 0 : i32
    %c0_i32_0 = arith.constant 0 : i32
    %c0_i32_1 = arith.constant 0 : i32
    return %c0_i32, %c0_i32_0 : i32, i32
  }
  func.func @transform_3(%arg0: i32) -> (i32, i32, i32) {
    %c0_i32 = arith.constant 0 : i32
    %c0_i32_0 = arith.constant 0 : i32
    %c0_i32_1 = arith.constant 0 : i32
    return %arg0, %c0_i32, %c0_i32_0 : i32, i32, i32
  }
}

</mosaic_0001>

<llo_original>
// kernel: tpu_custom_call.1
$region0: #{tpu_custom_call.1}
  #allocation0 [shape = 'u32[]', space=smem, size = 0x4, offset = 0x4, fixed_abs, tag = 'smem constant byte address 0x4 - core index']
  #allocation1 [shape = 'u32[72,128]{1,0:T(1,128)}', space=vmem, size = 0x9000, scoped, tag = 'internal scratch']
  %s0 = inlined_call_operand.vmem [shape: f32[64,8,32], index: 0, kind: input, shape index: {}]
  %s1 = inlined_call_operand.vmem [shape: f32[32,384], index: 1, kind: input, shape index: {}]
  %s2 = inlined_call_operand.vmem [shape: f32[1,384], index: 2, kind: input, shape index: {}]
  %s3 = inlined_call_operand.vmem [shape: f32[64,8,32], index: 3, kind: output, shape index: {}]
  %s4 = sld [smem:[#allocation0]]
  $region45: #{tpu_custom_call.1} parent=0
    _
  %s6 = ssub.s32 1, %s4
  %s7 = scalar_select 0, %s6, %s4
  loop: start=0, step=1, limit=4
  $region2: #{tpu_custom_call.1} parent=0 // loop_pre_header
    _
  $region3: #{tpu_custom_call.1} parent=0 // loop_header
    %s9 = sphi 0, %s13
    %p10 = scmp.ge.s32.totalorder %s9, 4
    %s19 = sphi 0, %s21
    %s22 = sphi 0, %s19
    %s23 = sphi 0, %s22
    %s39 = sphi 0, %s23
    %s43 = sphi 0, %s43
    %s45 = sphi 0, %s43
    %s46 = sphi 0, %s45
    %s60 = sphi 0, %s46
    %s64 = sphi 0, %s64
    %s66 = sphi 0, %s64
    %s67 = sphi 0, %s66
    %s81 = sphi 0, %s67
    %s87 = sphi 0, %s89
    %s90 = sphi 0, %s87
    %s91 = sphi 0, %s90
    %s107 = sphi 0, %s91
  $region4: #{tpu_custom_call.1} parent=0 // loop_header_branch
    %12 = sbr.rel (%p10) target = $region8
  $region5: #{tpu_custom_call.1} parent=0 // loop_body
    %s14 = ssub.s32 %s9, 1
    %s15 = ssub.s32 %s9, 2
    %s16 = sadd.s32 %s9, 1
    %s17 = ssub.s32 %s9, %s16
    %p18 = scmp.eq.s32.totalorder %s17, 0
    %s20 = sadd.s32 %s19, 1
    %s21 = scalar_select %p18, %s19, %s20
    %p24 = pneg %p18
    %p25 = scmp.eq.s32.totalorder %s9, 1
    %p26 = por %p24, %p25
    %p27 = scmp.ne.s32.totalorder %s19, %s22
    %p28 = scmp.eq.s32.totalorder %s9, 0
    %p29 = por %p27, %p28
    %p30 = scmp.ne.s32.totalorder %s19, %s22
    %p31 = scmp.eq.s32.totalorder %s14, 1
    %p32 = por %p30, %p31
    %p33 = scmp.ne.s32.totalorder %s22, %s23
    %p34 = scmp.eq.s32.totalorder %s14, 0
    %p35 = por %p33, %p34
    %p36 = scmp.ne.s32.totalorder %s22, %s23
    %p37 = scmp.eq.s32.totalorder %s15, 1
    %p38 = por %p36, %p37
    %p40 = scmp.ne.s32.totalorder %s23, %s39
    %p41 = scmp.eq.s32.totalorder %s15, 0
    %p42 = por %p40, %p41
    %s44 = sadd.s32 %s43, 1
    %p47 = scmp.eq.s32.totalorder %s9, 1
    %p48 = scmp.ne.s32.totalorder %s43, %s45
    %p49 = scmp.eq.s32.totalorder %s9, 0
    %p50 = por %p48, %p49
    %p51 = scmp.ne.s32.totalorder %s43, %s45
    %p52 = scmp.eq.s32.totalorder %s14, 1
    %p53 = por %p51, %p52
    %p54 = scmp.ne.s32.totalorder %s45, %s46
    %p55 = scmp.eq.s32.totalorder %s14, 0
    %p56 = por %p54, %p55
    %p57 = scmp.ne.s32.totalorder %s45, %s46
    %p58 = scmp.eq.s32.totalorder %s15, 1
    %p59 = por %p57, %p58
    %p61 = scmp.ne.s32.totalorder %s46, %s60
    %p62 = scmp.eq.s32.totalorder %s15, 0
    %p63 = por %p61, %p62
    %s65 = sadd.s32 %s64, 1
    %p68 = scmp.eq.s32.totalorder %s9, 1
    %p69 = scmp.ne.s32.totalorder %s64, %s66
    %p70 = scmp.eq.s32.totalorder %s9, 0
    %p71 = por %p69, %p70
    %p72 = scmp.ne.s32.totalorder %s64, %s66
    %p73 = scmp.eq.s32.totalorder %s14, 1
    %p74 = por %p72, %p73
    %p75 = scmp.ne.s32.totalorder %s66, %s67
    %p76 = scmp.eq.s32.totalorder %s14, 0
    %p77 = por %p75, %p76
    %p78 = scmp.ne.s32.totalorder %s66, %s67
    %p79 = scmp.eq.s32.totalorder %s15, 1
    %p80 = por %p78, %p79
    %p82 = scmp.ne.s32.totalorder %s67, %s81
    %p83 = scmp.eq.s32.totalorder %s15, 0
    %p84 = por %p82, %p83
    %s85 = ssub.s32 %s9, %s16
    %p86 = scmp.eq.s32.totalorder %s85, 0
    %s88 = sadd.s32 %s87, 1
    %s89 = scalar_select %p86, %s87, %s88
    %p92 = pneg %p86
    %p93 = scmp.eq.s32.totalorder %s9, 1
    %p94 = por %p92, %p93
    %p95 = scmp.ne.s32.totalorder %s87, %s90
    %p96 = scmp.eq.s32.totalorder %s9, 0
    %p97 = por %p95, %p96
    %p98 = scmp.ne.s32.totalorder %s87, %s90
    %p99 = scmp.eq.s32.totalorder %s14, 1
    %p100 = por %p98, %p99
    %p101 = scmp.ne.s32.totalorder %s90, %s91
    %p102 = scmp.eq.s32.totalorder %s14, 0
    %p103 = por %p101, %p102
    %p104 = scmp.ne.s32.totalorder %s90, %s91
    %p105 = scmp.eq.s32.totalorder %s15, 1
    %p106 = por %p104, %p105
    %p108 = scmp.ne.s32.totalorder %s91, %s107
    %p109 = scmp.eq.s32.totalorder %s15, 0
    %p110 = por %p108, %p109
    %p111 = scmp.le.s32.totalorder 1, %s9
    %p112 = scmp.lt.s32.totalorder %s9, 3
    %p113 = pnand %p111, %p112
    %p114 = pneg %p113
    // Predicated region
    $region9: #{tpu_custom_call.1} parent=5 // pred_check
      _
    $region10: #{tpu_custom_call.1} parent=5 // pred_check_branch
      %116 = sbr.rel (%p113) target = $region12
    $region11: #{tpu_custom_call.1} parent=5 // pred_region
      %s117 = ssub.s32 %s9, 1
      // Predicated region
      $region13: #{tpu_custom_call.1} parent=11 // pred_check
        %p118 = pneg %p56
      $region14: #{tpu_custom_call.1} parent=11 // pred_check_branch
        %120 = sbr.rel (%p118) target = $region16
      $region15: #{tpu_custom_call.1} parent=11 // pred_region
        _
      $region16: #{tpu_custom_call.1} parent=11 // pred_fallthru
        _
      // Predicated region
      $region17: #{tpu_custom_call.1} parent=11 // pred_check
        %p121 = pneg %p77
      $region18: #{tpu_custom_call.1} parent=11 // pred_check_branch
        %123 = sbr.rel (%p121) target = $region20
      $region19: #{tpu_custom_call.1} parent=11 // pred_region
        _
      $region20: #{tpu_custom_call.1} parent=11 // pred_fallthru
        _
    $region12: #{tpu_custom_call.1} parent=5 // pred_fallthru
      _
    %p124 = scmp.lt.s32.totalorder %s9, 2
    // Predicated region
    $region21: #{tpu_custom_call.1} parent=5 // pred_check
      %p125 = pneg %p124
    $region22: #{tpu_custom_call.1} parent=5 // pred_check_branch
      %127 = sbr.rel (%p125) target = $region24
    $region23: #{tpu_custom_call.1} parent=5 // pred_region
      // Predicated region
      $region25: #{tpu_custom_call.1} parent=23 // pred_check
        %p128 = pneg %p29
      $region26: #{tpu_custom_call.1} parent=23 // pred_check_branch
        %130 = sbr.rel (%p128) target = $region28
      $region27: #{tpu_custom_call.1} parent=23 // pred_region
        %s131 = smul.u32 32, %s9
        %p132 = scmp.lt.s32.totalorder %s131, 63
        %s133 = scalar_select %p132, %s131, 63
        %s134 = smul.addr %s133, 8
        %s135 = scalar_lea.vmem %s0, %s134
        %s136 = smul.u32 32, %s9
      $region28: #{tpu_custom_call.1} parent=23 // pred_fallthru
        _
    $region24: #{tpu_custom_call.1} parent=5 // pred_fallthru
      _
    %p137 = scmp.le.s32.totalorder 1, %s9
    %p138 = scmp.lt.s32.totalorder %s9, 3
    %p139 = pnand %p137, %p138
    %p140 = pneg %p139
    // Predicated region
    $region29: #{tpu_custom_call.1} parent=5 // pred_check
      _
    $region30: #{tpu_custom_call.1} parent=5 // pred_check_branch
      %142 = sbr.rel (%p139) target = $region32
    $region31: #{tpu_custom_call.1} parent=5 // pred_region
      %s143 = ssub.s32 %s9, 1
      %s144 = smul.u32 32, %s14
      %p145 = scmp.lt.s32.totalorder %s144, 63
      %s146 = scalar_select %p145, %s144, 63
      %s147 = smul.addr %s146, 8
      %s148 = scalar_lea.vmem %s0, %s147
      %p149 = pneg %p35
      %p150 = pneg %p32
      %p151 = pneg %p56
      %p152 = pneg %p53
      %p153 = pneg %p77
      %p154 = pneg %p74
      %p155 = pneg %p103
      %p156 = pneg %p100
      %s157 = smul.u32 32, %s14
      %p158 = scmp.lt.s32.totalorder %s157, 63
      %s159 = scalar_select %p158, %s157, 63
      %s160 = smul.addr %s159, 8
      %s161 = scalar_lea.vmem %s3, %s160
      %s162 = smul.u32 32, %s14
      %p163 = scmp.lt.s32.totalorder %s162, 63
      %s164 = scalar_select %p163, %s162, 63
      %s165 = smul.addr %s164, 8
      %s166 = scalar_lea.vmem %s0, %s165
      %s167 = smul.u32 32, %s14
      %s168 = smul.u32 32, %s14
      %p169 = scmp.lt.s32.totalorder %s168, 63
      %s170 = scalar_select %p169, %s168, 63
      %s171 = smul.addr %s170, 8
      %s172 = scalar_lea.vmem %s3, %s171
      %s173 = smul.u32 32, %s14
      %v174 = vld [vmem:[%s166] sm:$0xff]
      %v175 = vld [vmem:[%s166 + $0x8] sm:$0xff]
      %v176 = vld [vmem:[%s166 + $0x10] sm:$0xff]
      %v177 = vld [vmem:[%s166 + $0x18] sm:$0xff]
      %v178 = vld [vmem:[%s166 + $0x20] sm:$0xff]
      %v179 = vld [vmem:[%s166 + $0x28] sm:$0xff]
      %v180 = vld [vmem:[%s166 + $0x30] sm:$0xff]
      %v181 = vld [vmem:[%s166 + $0x38] sm:$0xff]
      %v182 = vld [vmem:[%s166 + $0x40] sm:$0xff]
      %v183 = vld [vmem:[%s166 + $0x48] sm:$0xff]
      %v184 = vld [vmem:[%s166 + $0x50] sm:$0xff]
      %v185 = vld [vmem:[%s166 + $0x58] sm:$0xff]
      %v186 = vld [vmem:[%s166 + $0x60] sm:$0xff]
      %v187 = vld [vmem:[%s166 + $0x68] sm:$0xff]
      %v188 = vld [vmem:[%s166 + $0x70] sm:$0xff]
      %v189 = vld [vmem:[%s166 + $0x78] sm:$0xff]
      %v190 = vld [vmem:[%s166 + $0x80] sm:$0xff]
      %v191 = vld [vmem:[%s166 + $0x88] sm:$0xff]
      %v192 = vld [vmem:[%s166 + $0x90] sm:$0xff]
      %v193 = vld [vmem:[%s166 + $0x98] sm:$0xff]
      %v194 = vld [vmem:[%s166 + $0xa0] sm:$0xff]
      %v195 = vld [vmem:[%s166 + $0xa8] sm:$0xff]
      %v196 = vld [vmem:[%s166 + $0xb0] sm:$0xff]
      %v197 = vld [vmem:[%s166 + $0xb8] sm:$0xff]
      %v198 = vld [vmem:[%s166 + $0xc0] sm:$0xff]
      %v199 = vld [vmem:[%s166 + $0xc8] sm:$0xff]
      %v200 = vld [vmem:[%s166 + $0xd0] sm:$0xff]
      %v201 = vld [vmem:[%s166 + $0xd8] sm:$0xff]
      %v202 = vld [vmem:[%s166 + $0xe0] sm:$0xff]
      %v203 = vld [vmem:[%s166 + $0xe8] sm:$0xff]
      %v204 = vld [vmem:[%s166 + $0xf0] sm:$0xff]
      %v205 = vld [vmem:[%s166 + $0xf8] sm:$0xff]
      %v206 = vld [vmem:[%s1] sm:$0xff]
      %v207 = vld [vmem:[%s1 + $0x8] sm:$0xff]
      %v208 = vld [vmem:[%s1 + $0x10] sm:$0xff]
      %v209 = vld [vmem:[%s1 + $0x18] sm:$0xff]
      %v210 = vld [vmem:[%s1 + $0x20] sm:$0xff]
      %v211 = vld [vmem:[%s1 + $0x28] sm:$0xff]
      %v212 = vld [vmem:[%s1 + $0x30] sm:$0xff]
      %v213 = vld [vmem:[%s1 + $0x38] sm:$0xff]
      %v214 = vld [vmem:[%s1 + $0x40] sm:$0xff]
      %v215 = vld [vmem:[%s1 + $0x48] sm:$0xff]
      %v216 = vld [vmem:[%s1 + $0x50] sm:$0xff]
      %v217 = vld [vmem:[%s1 + $0x58] sm:$0xff]
      %v218 = vld [vmem:[%s2] sm:$0x7]
      %v220 = vperm.slane %v218, 0
      %v221 = vperm.slane %v218, 1
      %v222 = vperm.slane %v218, 2
      %vm226 = vcmask 261120
      %v228 = vsel %vm226, %v174, 0
      %v231 = vsel %vm226, %v175, 0
      %v234 = vsel %vm226, %v176, 0
      %v237 = vsel %vm226, %v177, 0
      %v240 = vsel %vm226, %v178, 0
      %v243 = vsel %vm226, %v179, 0
      %v246 = vsel %vm226, %v180, 0
      %v249 = vsel %vm226, %v181, 0
      %v252 = vsel %vm226, %v182, 0
      %v255 = vsel %vm226, %v183, 0
      %v258 = vsel %vm226, %v184, 0
      %v261 = vsel %vm226, %v185, 0
      %v264 = vsel %vm226, %v186, 0
      %v267 = vsel %vm226, %v187, 0
      %v270 = vsel %vm226, %v188, 0
      %v273 = vsel %vm226, %v189, 0
      %v276 = vsel %vm226, %v190, 0
      %v279 = vsel %vm226, %v191, 0
      %v282 = vsel %vm226, %v192, 0
      %v285 = vsel %vm226, %v193, 0
      %v288 = vsel %vm226, %v194, 0
      %v291 = vsel %vm226, %v195, 0
      %v294 = vsel %vm226, %v196, 0
      %v297 = vsel %vm226, %v197, 0
      %v300 = vsel %vm226, %v198, 0
      %v303 = vsel %vm226, %v199, 0
      %v306 = vsel %vm226, %v200, 0
      %v309 = vsel %vm226, %v201, 0
      %v312 = vsel %vm226, %v202, 0
      %v315 = vsel %vm226, %v203, 0
      %v318 = vsel %vm226, %v204, 0
      %v321 = vsel %vm226, %v205, 0
      %323 = vmatpush.msra.mxu0 0.0
      %324 = vmatpush.msra.mxu0 0.0
      %325 = vmatpush.msra.mxu0 0.0
      %326 = vmatpush.msra.mxu0 0.0
      %327 = vmatpush.msra.mxu0 0.0
      %328 = vmatpush.msra.mxu0 0.0
      %329 = vmatpush.msra.mxu0 0.0
      %330 = vmatpush.msra.mxu0 0.0
      %331 = vmatpush.msra.mxu0 0.0
      %332 = vmatpush.msra.mxu0 0.0
      %333 = vmatpush.msra.mxu0 0.0
      %334 = vmatpush.msra.mxu0 0.0
      %335 = vmatpush.msra.mxu0 %v215
      %336 = vmatpush.msra.mxu0 %v212
      %337 = vmatpush.msra.mxu0 %v209
      %338 = vmatpush.msra.mxu0 %v206
      %339 = vmatmul.f32.gmra.mxu0 %v228
      %v340 = vpop.f32.mrf.mxu0
      %v341 = vadd.f32 %v220, %v340
      %342 = vmatmul.f32.gmra.mxu0 %v231
      %v343 = vpop.f32.mrf.mxu0
      %v344 = vadd.f32 %v220, %v343
      %345 = vmatmul.f32.gmra.mxu0 %v234
      %v346 = vpop.f32.mrf.mxu0
      %v347 = vadd.f32 %v220, %v346
      %348 = vmatmul.f32.gmra.mxu0 %v237
      %v349 = vpop.f32.mrf.mxu0
      %v350 = vadd.f32 %v220, %v349
      %351 = vmatmul.f32.gmra.mxu0 %v240
      %v352 = vpop.f32.mrf.mxu0
      %v353 = vadd.f32 %v220, %v352
      %354 = vmatmul.f32.gmra.mxu0 %v243
      %v355 = vpop.f32.mrf.mxu0
      %v356 = vadd.f32 %v220, %v355
      %357 = vmatmul.f32.gmra.mxu0 %v246
      %v358 = vpop.f32.mrf.mxu0
      %v359 = vadd.f32 %v220, %v358
      %360 = vmatmul.f32.gmra.mxu0 %v249
      %v361 = vpop.f32.mrf.mxu0
      %v362 = vadd.f32 %v220, %v361
      %363 = vmatmul.f32.gmra.mxu0 %v252
      %v364 = vpop.f32.mrf.mxu0
      %v365 = vadd.f32 %v220, %v364
      %366 = vmatmul.f32.gmra.mxu0 %v255
      %v367 = vpop.f32.mrf.mxu0
      %v368 = vadd.f32 %v220, %v367
      %369 = vmatmul.f32.gmra.mxu0 %v258
      %v370 = vpop.f32.mrf.mxu0
      %v371 = vadd.f32 %v220, %v370
      %372 = vmatmul.f32.gmra.mxu0 %v261
      %v373 = vpop.f32.mrf.mxu0
      %v374 = vadd.f32 %v220, %v373
      %375 = vmatmul.f32.gmra.mxu0 %v264
      %v376 = vpop.f32.mrf.mxu0
      %v377 = vadd.f32 %v220, %v376
      %378 = vmatmul.f32.gmra.mxu0 %v267
      %v379 = vpop.f32.mrf.mxu0
      %v380 = vadd.f32 %v220, %v379
      %381 = vmatmul.f32.gmra.mxu0 %v270
      %v382 = vpop.f32.mrf.mxu0
      %v383 = vadd.f32 %v220, %v382
      %384 = vmatmul.f32.gmra.mxu0 %v273
      %v385 = vpop.f32.mrf.mxu0
      %v386 = vadd.f32 %v220, %v385
      %387 = vmatmul.f32.gmra.mxu0 %v276
      %v388 = vpop.f32.mrf.mxu0
      %v389 = vadd.f32 %v220, %v388
      %390 = vmatmul.f32.gmra.mxu0 %v279
      %v391 = vpop.f32.mrf.mxu0
      %v392 = vadd.f32 %v220, %v391
      %393 = vmatmul.f32.gmra.mxu0 %v282
      %v394 = vpop.f32.mrf.mxu0
      %v395 = vadd.f32 %v220, %v394
      %396 = vmatmul.f32.gmra.mxu0 %v285
      %v397 = vpop.f32.mrf.mxu0
      %v398 = vadd.f32 %v220, %v397
      %399 = vmatmul.f32.gmra.mxu0 %v288
      %v400 = vpop.f32.mrf.mxu0
      %v401 = vadd.f32 %v220, %v400
      %402 = vmatmul.f32.gmra.mxu0 %v291
      %v403 = vpop.f32.mrf.mxu0
      %v404 = vadd.f32 %v220, %v403
      %405 = vmatmul.f32.gmra.mxu0 %v294
      %v406 = vpop.f32.mrf.mxu0
      %v407 = vadd.f32 %v220, %v406
      %408 = vmatmul.f32.gmra.mxu0 %v297
      %v409 = vpop.f32.mrf.mxu0
      %v410 = vadd.f32 %v220, %v409
      %411 = vmatmul.f32.gmra.mxu0 %v300
      %v412 = vpop.f32.mrf.mxu0
      %v413 = vadd.f32 %v220, %v412
      %414 = vmatmul.f32.gmra.mxu0 %v303
      %v415 = vpop.f32.mrf.mxu0
      %v416 = vadd.f32 %v220, %v415
      %417 = vmatmul.f32.gmra.mxu0 %v306
      %v418 = vpop.f32.mrf.mxu0
      %v419 = vadd.f32 %v220, %v418
      %420 = vmatmul.f32.gmra.mxu0 %v309
      %v421 = vpop.f32.mrf.mxu0
      %v422 = vadd.f32 %v220, %v421
      %423 = vmatmul.f32.gmra.mxu0 %v312
      %v424 = vpop.f32.mrf.mxu0
      %v425 = vadd.f32 %v220, %v424
      %426 = vmatmul.f32.gmra.mxu0 %v315
      %v427 = vpop.f32.mrf.mxu0
      %v428 = vadd.f32 %v220, %v427
      %429 = vmatmul.f32.gmra.mxu0 %v318
      %v430 = vpop.f32.mrf.mxu0
      %v431 = vadd.f32 %v220, %v430
      %432 = vmatmul.f32.gmra.mxu0 %v321
      %v433 = vpop.f32.mrf.mxu0
      %v434 = vadd.f32 %v220, %v433
      %435 = vdwg.mxu0
      %436 = vmatpush.msra.mxu0 0.0
      %437 = vmatpush.msra.mxu0 0.0
      %438 = vmatpush.msra.mxu0 0.0
      %439 = vmatpush.msra.mxu0 0.0
      %440 = vmatpush.msra.mxu0 0.0
      %441 = vmatpush.msra.mxu0 0.0
      %442 = vmatpush.msra.mxu0 0.0
      %443 = vmatpush.msra.mxu0 0.0
      %444 = vmatpush.msra.mxu0 0.0
      %445 = vmatpush.msra.mxu0 0.0
      %446 = vmatpush.msra.mxu0 0.0
      %447 = vmatpush.msra.mxu0 0.0
      %448 = vmatpush.msra.mxu0 %v216
      %449 = vmatpush.msra.mxu0 %v213
      %450 = vmatpush.msra.mxu0 %v210
      %451 = vmatpush.msra.mxu0 %v207
      %452 = vmatmul.f32.gmra.mxu0 %v228
      %v453 = vpop.f32.mrf.mxu0
      %v454 = vadd.f32 %v221, %v453
      %455 = vmatmul.f32.gmra.mxu0 %v231
      %v456 = vpop.f32.mrf.mxu0
      %v457 = vadd.f32 %v221, %v456
      %458 = vmatmul.f32.gmra.mxu0 %v234
      %v459 = vpop.f32.mrf.mxu0
      %v460 = vadd.f32 %v221, %v459
      %461 = vmatmul.f32.gmra.mxu0 %v237
      %v462 = vpop.f32.mrf.mxu0
      %v463 = vadd.f32 %v221, %v462
      %464 = vmatmul.f32.gmra.mxu0 %v240
      %v465 = vpop.f32.mrf.mxu0
      %v466 = vadd.f32 %v221, %v465
      %467 = vmatmul.f32.gmra.mxu0 %v243
      %v468 = vpop.f32.mrf.mxu0
      %v469 = vadd.f32 %v221, %v468
      %470 = vmatmul.f32.gmra.mxu0 %v246
      %v471 = vpop.f32.mrf.mxu0
      %v472 = vadd.f32 %v221, %v471
      %473 = vmatmul.f32.gmra.mxu0 %v249
      %v474 = vpop.f32.mrf.mxu0
      %v475 = vadd.f32 %v221, %v474
      %476 = vmatmul.f32.gmra.mxu0 %v252
      %v477 = vpop.f32.mrf.mxu0
      %v478 = vadd.f32 %v221, %v477
      %479 = vmatmul.f32.gmra.mxu0 %v255
      %v480 = vpop.f32.mrf.mxu0
      %v481 = vadd.f32 %v221, %v480
      %482 = vmatmul.f32.gmra.mxu0 %v258
      %v483 = vpop.f32.mrf.mxu0
      %v484 = vadd.f32 %v221, %v483
      %485 = vmatmul.f32.gmra.mxu0 %v261
      %v486 = vpop.f32.mrf.mxu0
      %v487 = vadd.f32 %v221, %v486
      %488 = vmatmul.f32.gmra.mxu0 %v264
      %v489 = vpop.f32.mrf.mxu0
      %v490 = vadd.f32 %v221, %v489
      %491 = vmatmul.f32.gmra.mxu0 %v267
      %v492 = vpop.f32.mrf.mxu0
      %v493 = vadd.f32 %v221, %v492
      %494 = vmatmul.f32.gmra.mxu0 %v270
      %v495 = vpop.f32.mrf.mxu0
      %v496 = vadd.f32 %v221, %v495
      %497 = vmatmul.f32.gmra.mxu0 %v273
      %v498 = vpop.f32.mrf.mxu0
      %v499 = vadd.f32 %v221, %v498
      %500 = vmatmul.f32.gmra.mxu0 %v276
      %v501 = vpop.f32.mrf.mxu0
      %v502 = vadd.f32 %v221, %v501
      %503 = vmatmul.f32.gmra.mxu0 %v279
      %v504 = vpop.f32.mrf.mxu0
      %v505 = vadd.f32 %v221, %v504
      %506 = vmatmul.f32.gmra.mxu0 %v282
      %v507 = vpop.f32.mrf.mxu0
      %v508 = vadd.f32 %v221, %v507
      %509 = vmatmul.f32.gmra.mxu0 %v285
      %v510 = vpop.f32.mrf.mxu0
      %v511 = vadd.f32 %v221, %v510
      %512 = vmatmul.f32.gmra.mxu0 %v288
      %v513 = vpop.f32.mrf.mxu0
      %v514 = vadd.f32 %v221, %v513
      %515 = vmatmul.f32.gmra.mxu0 %v291
      %v516 = vpop.f32.mrf.mxu0
      %v517 = vadd.f32 %v221, %v516
      %518 = vmatmul.f32.gmra.mxu0 %v294
      %v519 = vpop.f32.mrf.mxu0
      %v520 = vadd.f32 %v221, %v519
      %521 = vmatmul.f32.gmra.mxu0 %v297
      %v522 = vpop.f32.mrf.mxu0
      %v523 = vadd.f32 %v221, %v522
      %524 = vmatmul.f32.gmra.mxu0 %v300
      %v525 = vpop.f32.mrf.mxu0
      %v526 = vadd.f32 %v221, %v525
      %527 = vmatmul.f32.gmra.mxu0 %v303
      %v528 = vpop.f32.mrf.mxu0
      %v529 = vadd.f32 %v221, %v528
      %530 = vmatmul.f32.gmra.mxu0 %v306
      %v531 = vpop.f32.mrf.mxu0
      %v532 = vadd.f32 %v221, %v531
      %533 = vmatmul.f32.gmra.mxu0 %v309
      %v534 = vpop.f32.mrf.mxu0
      %v535 = vadd.f32 %v221, %v534
      %536 = vmatmul.f32.gmra.mxu0 %v312
      %v537 = vpop.f32.mrf.mxu0
      %v538 = vadd.f32 %v221, %v537
      %539 = vmatmul.f32.gmra.mxu0 %v315
      %v540 = vpop.f32.mrf.mxu0
      %v541 = vadd.f32 %v221, %v540
      %542 = vmatmul.f32.gmra.mxu0 %v318
      %v543 = vpop.f32.mrf.mxu0
      %v544 = vadd.f32 %v221, %v543
      %545 = vmatmul.f32.gmra.mxu0 %v321
      %v546 = vpop.f32.mrf.mxu0
      %v547 = vadd.f32 %v221, %v546
      %548 = vdwg.mxu0
      %549 = vmatpush.msra.mxu0 0.0
      %550 = vmatpush.msra.mxu0 0.0
      %551 = vmatpush.msra.mxu0 0.0
      %552 = vmatpush.msra.mxu0 0.0
      %553 = vmatpush.msra.mxu0 0.0
      %554 = vmatpush.msra.mxu0 0.0
      %555 = vmatpush.msra.mxu0 0.0
      %556 = vmatpush.msra.mxu0 0.0
      %557 = vmatpush.msra.mxu0 0.0
      %558 = vmatpush.msra.mxu0 0.0
      %559 = vmatpush.msra.mxu0 0.0
      %560 = vmatpush.msra.mxu0 0.0
      %561 = vmatpush.msra.mxu0 %v217
      %562 = vmatpush.msra.mxu0 %v214
      %563 = vmatpush.msra.mxu0 %v211
      %564 = vmatpush.msra.mxu0 %v208
      %565 = vmatmul.f32.gmra.mxu0 %v228
      %v566 = vpop.f32.mrf.mxu0
      %v567 = vadd.f32 %v222, %v566
      %568 = vmatmul.f32.gmra.mxu0 %v231
      %v569 = vpop.f32.mrf.mxu0
      %v570 = vadd.f32 %v222, %v569
      %571 = vmatmul.f32.gmra.mxu0 %v234
      %v572 = vpop.f32.mrf.mxu0
      %v573 = vadd.f32 %v222, %v572
      %574 = vmatmul.f32.gmra.mxu0 %v237
      %v575 = vpop.f32.mrf.mxu0
      %v576 = vadd.f32 %v222, %v575
      %577 = vmatmul.f32.gmra.mxu0 %v240
      %v578 = vpop.f32.mrf.mxu0
      %v579 = vadd.f32 %v222, %v578
      %580 = vmatmul.f32.gmra.mxu0 %v243
      %v581 = vpop.f32.mrf.mxu0
      %v582 = vadd.f32 %v222, %v581
      %583 = vmatmul.f32.gmra.mxu0 %v246
      %v584 = vpop.f32.mrf.mxu0
      %v585 = vadd.f32 %v222, %v584
      %586 = vmatmul.f32.gmra.mxu0 %v249
      %v587 = vpop.f32.mrf.mxu0
      %v588 = vadd.f32 %v222, %v587
      %589 = vmatmul.f32.gmra.mxu0 %v252
      %v590 = vpop.f32.mrf.mxu0
      %v591 = vadd.f32 %v222, %v590
      %592 = vmatmul.f32.gmra.mxu0 %v255
      %v593 = vpop.f32.mrf.mxu0
      %v594 = vadd.f32 %v222, %v593
      %595 = vmatmul.f32.gmra.mxu0 %v258
      %v596 = vpop.f32.mrf.mxu0
      %v597 = vadd.f32 %v222, %v596
      %598 = vmatmul.f32.gmra.mxu0 %v261
      %v599 = vpop.f32.mrf.mxu0
      %v600 = vadd.f32 %v222, %v599
      %601 = vmatmul.f32.gmra.mxu0 %v264
      %v602 = vpop.f32.mrf.mxu0
      %v603 = vadd.f32 %v222, %v602
      %604 = vmatmul.f32.gmra.mxu0 %v267
      %v605 = vpop.f32.mrf.mxu0
      %v606 = vadd.f32 %v222, %v605
      %607 = vmatmul.f32.gmra.mxu0 %v270
      %v608 = vpop.f32.mrf.mxu0
      %v609 = vadd.f32 %v222, %v608
      %610 = vmatmul.f32.gmra.mxu0 %v273
      %v611 = vpop.f32.mrf.mxu0
      %v612 = vadd.f32 %v222, %v611
      %613 = vmatmul.f32.gmra.mxu0 %v276
      %v614 = vpop.f32.mrf.mxu0
      %v615 = vadd.f32 %v222, %v614
      %616 = vmatmul.f32.gmra.mxu0 %v279
      %v617 = vpop.f32.mrf.mxu0
      %v618 = vadd.f32 %v222, %v617
      %619 = vmatmul.f32.gmra.mxu0 %v282
      %v620 = vpop.f32.mrf.mxu0
      %v621 = vadd.f32 %v222, %v620
      %622 = vmatmul.f32.gmra.mxu0 %v285
      %v623 = vpop.f32.mrf.mxu0
      %v624 = vadd.f32 %v222, %v623
      %625 = vmatmul.f32.gmra.mxu0 %v288
      %v626 = vpop.f32.mrf.mxu0
      %v627 = vadd.f32 %v222, %v626
      %628 = vmatmul.f32.gmra.mxu0 %v291
      %v629 = vpop.f32.mrf.mxu0
      %v630 = vadd.f32 %v222, %v629
      %631 = vmatmul.f32.gmra.mxu0 %v294
      %v632 = vpop.f32.mrf.mxu0
      %v633 = vadd.f32 %v222, %v632
      %634 = vmatmul.f32.gmra.mxu0 %v297
      %v635 = vpop.f32.mrf.mxu0
      %v636 = vadd.f32 %v222, %v635
      %637 = vmatmul.f32.gmra.mxu0 %v300
      %v638 = vpop.f32.mrf.mxu0
      %v639 = vadd.f32 %v222, %v638
      %640 = vmatmul.f32.gmra.mxu0 %v303
      %v641 = vpop.f32.mrf.mxu0
      %v642 = vadd.f32 %v222, %v641
      %643 = vmatmul.f32.gmra.mxu0 %v306
      %v644 = vpop.f32.mrf.mxu0
      %v645 = vadd.f32 %v222, %v644
      %646 = vmatmul.f32.gmra.mxu0 %v309
      %v647 = vpop.f32.mrf.mxu0
      %v648 = vadd.f32 %v222, %v647
      %649 = vmatmul.f32.gmra.mxu0 %v312
      %v650 = vpop.f32.mrf.mxu0
      %v651 = vadd.f32 %v222, %v650
      %652 = vmatmul.f32.gmra.mxu0 %v315
      %v653 = vpop.f32.mrf.mxu0
      %v654 = vadd.f32 %v222, %v653
      %655 = vmatmul.f32.gmra.mxu0 %v318
      %v656 = vpop.f32.mrf.mxu0
      %v657 = vadd.f32 %v222, %v656
      %658 = vmatmul.f32.gmra.mxu0 %v321
      %v659 = vpop.f32.mrf.mxu0
      %v660 = vadd.f32 %v222, %v659
      %661 = vdwg.mxu0
      %662 = vmatpush.xpose.msra.mxu0 0.0
      %663 = vmatpush.xpose.msra.mxu0 0.0
      %664 = vmatpush.xpose.msra.mxu0 0.0
      %665 = vmatpush.xpose.msra.mxu0 0.0
      %666 = vmatpush.xpose.msra.mxu0 0.0
      %667 = vmatpush.xpose.msra.mxu0 0.0
      %668 = vmatpush.xpose.msra.mxu0 0.0
      %669 = vmatpush.xpose.msra.mxu0 0.0
      %670 = vmatpush.xpose.msra.mxu0 0.0
      %671 = vmatpush.xpose.msra.mxu0 0.0
      %672 = vmatpush.xpose.msra.mxu0 0.0
      %673 = vmatpush.xpose.msra.mxu0 0.0
      %674 = vmatpush.xpose.msra.mxu0 0.0
      %675 = vmatpush.xpose.msra.mxu0 0.0
      %676 = vmatpush.xpose.msra.mxu0 0.0
      %677 = vmatpush.xpose.msra.mxu0 %v454
      %678 = vmatmul.f32.gmra.mxu0 %v341
      %v679 = vpop.f32.mrf.mxu0
      %v680 = vadd.f32 0.0, %v679
      %681 = vdwg.mxu0
      %682 = vmatpush.xpose.msra.mxu0 0.0
      %683 = vmatpush.xpose.msra.mxu0 0.0
      %684 = vmatpush.xpose.msra.mxu0 0.0
      %685 = vmatpush.xpose.msra.mxu0 0.0
      %686 = vmatpush.xpose.msra.mxu0 0.0
      %687 = vmatpush.xpose.msra.mxu0 0.0
      %688 = vmatpush.xpose.msra.mxu0 0.0
      %689 = vmatpush.xpose.msra.mxu0 0.0
      %690 = vmatpush.xpose.msra.mxu0 0.0
      %691 = vmatpush.xpose.msra.mxu0 0.0
      %692 = vmatpush.xpose.msra.mxu0 0.0
      %693 = vmatpush.xpose.msra.mxu0 0.0
      %694 = vmatpush.xpose.msra.mxu0 0.0
      %695 = vmatpush.xpose.msra.mxu0 0.0
      %696 = vmatpush.xpose.msra.mxu0 0.0
      %697 = vmatpush.xpose.msra.mxu0 %v457
      %698 = vmatmul.f32.gmra.mxu0 %v344
      %v699 = vpop.f32.mrf.mxu0
      %v700 = vadd.f32 0.0, %v699
      %701 = vdwg.mxu0
      %702 = vmatpush.xpose.msra.mxu0 0.0
      %703 = vmatpush.xpose.msra.mxu0 0.0
      %704 = vmatpush.xpose.msra.mxu0 0.0
      %705 = vmatpush.xpose.msra.mxu0 0.0
      %706 = vmatpush.xpose.msra.mxu0 0.0
      %707 = vmatpush.xpose.msra.mxu0 0.0
      %708 = vmatpush.xpose.msra.mxu0 0.0
      %709 = vmatpush.xpose.msra.mxu0 0.0
      %710 = vmatpush.xpose.msra.mxu0 0.0
      %711 = vmatpush.xpose.msra.mxu0 0.0
      %712 = vmatpush.xpose.msra.mxu0 0.0
      %713 = vmatpush.xpose.msra.mxu0 0.0
      %714 = vmatpush.xpose.msra.mxu0 0.0
      %715 = vmatpush.xpose.msra.mxu0 0.0
      %716 = vmatpush.xpose.msra.mxu0 0.0
      %717 = vmatpush.xpose.msra.mxu0 %v460
      %718 = vmatmul.f32.gmra.mxu0 %v347
      %v719 = vpop.f32.mrf.mxu0
      %v720 = vadd.f32 0.0, %v719
      %721 = vdwg.mxu0
      %722 = vmatpush.xpose.msra.mxu0 0.0
      %723 = vmatpush.xpose.msra.mxu0 0.0
      %724 = vmatpush.xpose.msra.mxu0 0.0
      %725 = vmatpush.xpose.msra.mxu0 0.0
      %726 = vmatpush.xpose.msra.mxu0 0.0
      %727 = vmatpush.xpose.msra.mxu0 0.0
      %728 = vmatpush.xpose.msra.mxu0 0.0
      %729 = vmatpush.xpose.msra.mxu0 0.0
      %730 = vmatpush.xpose.msra.mxu0 0.0
      %731 = vmatpush.xpose.msra.mxu0 0.0
      %732 = vmatpush.xpose.msra.mxu0 0.0
      %733 = vmatpush.xpose.msra.mxu0 0.0
      %734 = vmatpush.xpose.msra.mxu0 0.0
      %735 = vmatpush.xpose.msra.mxu0 0.0
      %736 = vmatpush.xpose.msra.mxu0 0.0
      %737 = vmatpush.xpose.msra.mxu0 %v463
      %738 = vmatmul.f32.gmra.mxu0 %v350
      %v739 = vpop.f32.mrf.mxu0
      %v740 = vadd.f32 0.0, %v739
      %741 = vdwg.mxu0
      %742 = vmatpush.xpose.msra.mxu0 0.0
      %743 = vmatpush.xpose.msra.mxu0 0.0
      %744 = vmatpush.xpose.msra.mxu0 0.0
      %745 = vmatpush.xpose.msra.mxu0 0.0
      %746 = vmatpush.xpose.msra.mxu0 0.0
      %747 = vmatpush.xpose.msra.mxu0 0.0
      %748 = vmatpush.xpose.msra.mxu0 0.0
      %749 = vmatpush.xpose.msra.mxu0 0.0
      %750 = vmatpush.xpose.msra.mxu0 0.0
      %751 = vmatpush.xpose.msra.mxu0 0.0
      %752 = vmatpush.xpose.msra.mxu0 0.0
      %753 = vmatpush.xpose.msra.mxu0 0.0
      %754 = vmatpush.xpose.msra.mxu0 0.0
      %755 = vmatpush.xpose.msra.mxu0 0.0
      %756 = vmatpush.xpose.msra.mxu0 0.0
      %757 = vmatpush.xpose.msra.mxu0 %v466
      %758 = vmatmul.f32.gmra.mxu0 %v353
      %v759 = vpop.f32.mrf.mxu0
      %v760 = vadd.f32 0.0, %v759
      %761 = vdwg.mxu0
      %762 = vmatpush.xpose.msra.mxu0 0.0
      %763 = vmatpush.xpose.msra.mxu0 0.0
      %764 = vmatpush.xpose.msra.mxu0 0.0
      %765 = vmatpush.xpose.msra.mxu0 0.0
      %766 = vmatpush.xpose.msra.mxu0 0.0
      %767 = vmatpush.xpose.msra.mxu0 0.0
      %768 = vmatpush.xpose.msra.mxu0 0.0
      %769 = vmatpush.xpose.msra.mxu0 0.0
      %770 = vmatpush.xpose.msra.mxu0 0.0
      %771 = vmatpush.xpose.msra.mxu0 0.0
      %772 = vmatpush.xpose.msra.mxu0 0.0
      %773 = vmatpush.xpose.msra.mxu0 0.0
      %774 = vmatpush.xpose.msra.mxu0 0.0
      %775 = vmatpush.xpose.msra.mxu0 0.0
      %776 = vmatpush.xpose.msra.mxu0 0.0
      %777 = vmatpush.xpose.msra.mxu0 %v469
      %778 = vmatmul.f32.gmra.mxu0 %v356
      %v779 = vpop.f32.mrf.mxu0
      %v780 = vadd.f32 0.0, %v779
      %781 = vdwg.mxu0
      %782 = vmatpush.xpose.msra.mxu0 0.0
      %783 = vmatpush.xpose.msra.mxu0 0.0
      %784 = vmatpush.xpose.msra.mxu0 0.0
      %785 = vmatpush.xpose.msra.mxu0 0.0
      %786 = vmatpush.xpose.msra.mxu0 0.0
      %787 = vmatpush.xpose.msra.mxu0 0.0
      %788 = vmatpush.xpose.msra.mxu0 0.0
      %789 = vmatpush.xpose.msra.mxu0 0.0
      %790 = vmatpush.xpose.msra.mxu0 0.0
      %791 = vmatpush.xpose.msra.mxu0 0.0
      %792 = vmatpush.xpose.msra.mxu0 0.0
      %793 = vmatpush.xpose.msra.mxu0 0.0
      %794 = vmatpush.xpose.msra.mxu0 0.0
      %795 = vmatpush.xpose.msra.mxu0 0.0
      %796 = vmatpush.xpose.msra.mxu0 0.0
      %797 = vmatpush.xpose.msra.mxu0 %v472
      %798 = vmatmul.f32.gmra.mxu0 %v359
      %v799 = vpop.f32.mrf.mxu0
      %v800 = vadd.f32 0.0, %v799
      %801 = vdwg.mxu0
      %802 = vmatpush.xpose.msra.mxu0 0.0
      %803 = vmatpush.xpose.msra.mxu0 0.0
      %804 = vmatpush.xpose.msra.mxu0 0.0
      %805 = vmatpush.xpose.msra.mxu0 0.0
      %806 = vmatpush.xpose.msra.mxu0 0.0
      %807 = vmatpush.xpose.msra.mxu0 0.0
      %808 = vmatpush.xpose.msra.mxu0 0.0
      %809 = vmatpush.xpose.msra.mxu0 0.0
      %810 = vmatpush.xpose.msra.mxu0 0.0
      %811 = vmatpush.xpose.msra.mxu0 0.0
      %812 = vmatpush.xpose.msra.mxu0 0.0
      %813 = vmatpush.xpose.msra.mxu0 0.0
      %814 = vmatpush.xpose.msra.mxu0 0.0
      %815 = vmatpush.xpose.msra.mxu0 0.0
      %816 = vmatpush.xpose.msra.mxu0 0.0
      %817 = vmatpush.xpose.msra.mxu0 %v475
      %818 = vmatmul.f32.gmra.mxu0 %v362
      %v819 = vpop.f32.mrf.mxu0
      %v820 = vadd.f32 0.0, %v819
      %821 = vdwg.mxu0
      %822 = vmatpush.xpose.msra.mxu0 0.0
      %823 = vmatpush.xpose.msra.mxu0 0.0
      %824 = vmatpush.xpose.msra.mxu0 0.0
      %825 = vmatpush.xpose.msra.mxu0 0.0
      %826 = vmatpush.xpose.msra.mxu0 0.0
      %827 = vmatpush.xpose.msra.mxu0 0.0
      %828 = vmatpush.xpose.msra.mxu0 0.0
      %829 = vmatpush.xpose.msra.mxu0 0.0
      %830 = vmatpush.xpose.msra.mxu0 0.0
      %831 = vmatpush.xpose.msra.mxu0 0.0
      %832 = vmatpush.xpose.msra.mxu0 0.0
      %833 = vmatpush.xpose.msra.mxu0 0.0
      %834 = vmatpush.xpose.msra.mxu0 0.0
      %835 = vmatpush.xpose.msra.mxu0 0.0
      %836 = vmatpush.xpose.msra.mxu0 0.0
      %837 = vmatpush.xpose.msra.mxu0 %v478
      %838 = vmatmul.f32.gmra.mxu0 %v365
      %v839 = vpop.f32.mrf.mxu0
      %v840 = vadd.f32 0.0, %v839
      %841 = vdwg.mxu0
      %842 = vmatpush.xpose.msra.mxu0 0.0
      %843 = vmatpush.xpose.msra.mxu0 0.0
      %844 = vmatpush.xpose.msra.mxu0 0.0
      %845 = vmatpush.xpose.msra.mxu0 0.0
      %846 = vmatpush.xpose.msra.mxu0 0.0
      %847 = vmatpush.xpose.msra.mxu0 0.0
      %848 = vmatpush.xpose.msra.mxu0 0.0
      %849 = vmatpush.xpose.msra.mxu0 0.0
      %850 = vmatpush.xpose.msra.mxu0 0.0
      %851 = vmatpush.xpose.msra.mxu0 0.0
      %852 = vmatpush.xpose.msra.mxu0 0.0
      %853 = vmatpush.xpose.msra.mxu0 0.0
      %854 = vmatpush.xpose.msra.mxu0 0.0
      %855 = vmatpush.xpose.msra.mxu0 0.0
      %856 = vmatpush.xpose.msra.mxu0 0.0
      %857 = vmatpush.xpose.msra.mxu0 %v481
      %858 = vmatmul.f32.gmra.mxu0 %v368
      %v859 = vpop.f32.mrf.mxu0
      %v860 = vadd.f32 0.0, %v859
      %861 = vdwg.mxu0
      %862 = vmatpush.xpose.msra.mxu0 0.0
      %863 = vmatpush.xpose.msra.mxu0 0.0
      %864 = vmatpush.xpose.msra.mxu0 0.0
      %865 = vmatpush.xpose.msra.mxu0 0.0
      %866 = vmatpush.xpose.msra.mxu0 0.0
      %867 = vmatpush.xpose.msra.mxu0 0.0
      %868 = vmatpush.xpose.msra.mxu0 0.0
      %869 = vmatpush.xpose.msra.mxu0 0.0
      %870 = vmatpush.xpose.msra.mxu0 0.0
      %871 = vmatpush.xpose.msra.mxu0 0.0
      %872 = vmatpush.xpose.msra.mxu0 0.0
      %873 = vmatpush.xpose.msra.mxu0 0.0
      %874 = vmatpush.xpose.msra.mxu0 0.0
      %875 = vmatpush.xpose.msra.mxu0 0.0
      %876 = vmatpush.xpose.msra.mxu0 0.0
      %877 = vmatpush.xpose.msra.mxu0 %v484
      %878 = vmatmul.f32.gmra.mxu0 %v371
      %v879 = vpop.f32.mrf.mxu0
      %v880 = vadd.f32 0.0, %v879
      %881 = vdwg.mxu0
      %882 = vmatpush.xpose.msra.mxu0 0.0
      %883 = vmatpush.xpose.msra.mxu0 0.0
      %884 = vmatpush.xpose.msra.mxu0 0.0
      %885 = vmatpush.xpose.msra.mxu0 0.0
      %886 = vmatpush.xpose.msra.mxu0 0.0
      %887 = vmatpush.xpose.msra.mxu0 0.0
      %888 = vmatpush.xpose.msra.mxu0 0.0
      %889 = vmatpush.xpose.msra.mxu0 0.0
      %890 = vmatpush.xpose.msra.mxu0 0.0
      %891 = vmatpush.xpose.msra.mxu0 0.0
      %892 = vmatpush.xpose.msra.mxu0 0.0
      %893 = vmatpush.xpose.msra.mxu0 0.0
      %894 = vmatpush.xpose.msra.mxu0 0.0
      %895 = vmatpush.xpose.msra.mxu0 0.0
      %896 = vmatpush.xpose.msra.mxu0 0.0
      %897 = vmatpush.xpose.msra.mxu0 %v487
      %898 = vmatmul.f32.gmra.mxu0 %v374
      %v899 = vpop.f32.mrf.mxu0
      %v900 = vadd.f32 0.0, %v899
      %901 = vdwg.mxu0
      %902 = vmatpush.xpose.msra.mxu0 0.0
      %903 = vmatpush.xpose.msra.mxu0 0.0
      %904 = vmatpush.xpose.msra.mxu0 0.0
      %905 = vmatpush.xpose.msra.mxu0 0.0
      %906 = vmatpush.xpose.msra.mxu0 0.0
      %907 = vmatpush.xpose.msra.mxu0 0.0
      %908 = vmatpush.xpose.msra.mxu0 0.0
      %909 = vmatpush.xpose.msra.mxu0 0.0
      %910 = vmatpush.xpose.msra.mxu0 0.0
      %911 = vmatpush.xpose.msra.mxu0 0.0
      %912 = vmatpush.xpose.msra.mxu0 0.0
      %913 = vmatpush.xpose.msra.mxu0 0.0
      %914 = vmatpush.xpose.msra.mxu0 0.0
      %915 = vmatpush.xpose.msra.mxu0 0.0
      %916 = vmatpush.xpose.msra.mxu0 0.0
      %917 = vmatpush.xpose.msra.mxu0 %v490
      %918 = vmatmul.f32.gmra.mxu0 %v377
      %v919 = vpop.f32.mrf.mxu0
      %v920 = vadd.f32 0.0, %v919
      %921 = vdwg.mxu0
      %922 = vmatpush.xpose.msra.mxu0 0.0
      %923 = vmatpush.xpose.msra.mxu0 0.0
      %924 = vmatpush.xpose.msra.mxu0 0.0
      %925 = vmatpush.xpose.msra.mxu0 0.0
      %926 = vmatpush.xpose.msra.mxu0 0.0
      %927 = vmatpush.xpose.msra.mxu0 0.0
      %928 = vmatpush.xpose.msra.mxu0 0.0
      %929 = vmatpush.xpose.msra.mxu0 0.0
      %930 = vmatpush.xpose.msra.mxu0 0.0
      %931 = vmatpush.xpose.msra.mxu0 0.0
      %932 = vmatpush.xpose.msra.mxu0 0.0
      %933 = vmatpush.xpose.msra.mxu0 0.0
      %934 = vmatpush.xpose.msra.mxu0 0.0
      %935 = vmatpush.xpose.msra.mxu0 0.0
      %936 = vmatpush.xpose.msra.mxu0 0.0
      %937 = vmatpush.xpose.msra.mxu0 %v493
      %938 = vmatmul.f32.gmra.mxu0 %v380
      %v939 = vpop.f32.mrf.mxu0
      %v940 = vadd.f32 0.0, %v939
      %941 = vdwg.mxu0
      %942 = vmatpush.xpose.msra.mxu0 0.0
      %943 = vmatpush.xpose.msra.mxu0 0.0
      %944 = vmatpush.xpose.msra.mxu0 0.0
      %945 = vmatpush.xpose.msra.mxu0 0.0
      %946 = vmatpush.xpose.msra.mxu0 0.0
      %947 = vmatpush.xpose.msra.mxu0 0.0
      %948 = vmatpush.xpose.msra.mxu0 0.0
      %949 = vmatpush.xpose.msra.mxu0 0.0
      %950 = vmatpush.xpose.msra.mxu0 0.0
      %951 = vmatpush.xpose.msra.mxu0 0.0
      %952 = vmatpush.xpose.msra.mxu0 0.0
      %953 = vmatpush.xpose.msra.mxu0 0.0
      %954 = vmatpush.xpose.msra.mxu0 0.0
      %955 = vmatpush.xpose.msra.mxu0 0.0
      %956 = vmatpush.xpose.msra.mxu0 0.0
      %957 = vmatpush.xpose.msra.mxu0 %v496
      %958 = vmatmul.f32.gmra.mxu0 %v383
      %v959 = vpop.f32.mrf.mxu0
      %v960 = vadd.f32 0.0, %v959
      %961 = vdwg.mxu0
      %962 = vmatpush.xpose.msra.mxu0 0.0
      %963 = vmatpush.xpose.msra.mxu0 0.0
      %964 = vmatpush.xpose.msra.mxu0 0.0
      %965 = vmatpush.xpose.msra.mxu0 0.0
      %966 = vmatpush.xpose.msra.mxu0 0.0
      %967 = vmatpush.xpose.msra.mxu0 0.0
      %968 = vmatpush.xpose.msra.mxu0 0.0
      %969 = vmatpush.xpose.msra.mxu0 0.0
      %970 = vmatpush.xpose.msra.mxu0 0.0
      %971 = vmatpush.xpose.msra.mxu0 0.0
      %972 = vmatpush.xpose.msra.mxu0 0.0
      %973 = vmatpush.xpose.msra.mxu0 0.0
      %974 = vmatpush.xpose.msra.mxu0 0.0
      %975 = vmatpush.xpose.msra.mxu0 0.0
      %976 = vmatpush.xpose.msra.mxu0 0.0
      %977 = vmatpush.xpose.msra.mxu0 %v499
      %978 = vmatmul.f32.gmra.mxu0 %v386
      %v979 = vpop.f32.mrf.mxu0
      %v980 = vadd.f32 0.0, %v979
      %981 = vdwg.mxu0
      %982 = vmatpush.xpose.msra.mxu0 0.0
      %983 = vmatpush.xpose.msra.mxu0 0.0
      %984 = vmatpush.xpose.msra.mxu0 0.0
      %985 = vmatpush.xpose.msra.mxu0 0.0
      %986 = vmatpush.xpose.msra.mxu0 0.0
      %987 = vmatpush.xpose.msra.mxu0 0.0
      %988 = vmatpush.xpose.msra.mxu0 0.0
      %989 = vmatpush.xpose.msra.mxu0 0.0
      %990 = vmatpush.xpose.msra.mxu0 0.0
      %991 = vmatpush.xpose.msra.mxu0 0.0
      %992 = vmatpush.xpose.msra.mxu0 0.0
      %993 = vmatpush.xpose.msra.mxu0 0.0
      %994 = vmatpush.xpose.msra.mxu0 0.0
      %995 = vmatpush.xpose.msra.mxu0 0.0
      %996 = vmatpush.xpose.msra.mxu0 0.0
      %997 = vmatpush.xpose.msra.mxu0 %v502
      %998 = vmatmul.f32.gmra.mxu0 %v389
      %v999 = vpop.f32.mrf.mxu0
      %v1000 = vadd.f32 0.0, %v999
      %1001 = vdwg.mxu0
      %1002 = vmatpush.xpose.msra.mxu0 0.0
      %1003 = vmatpush.xpose.msra.mxu0 0.0
      %1004 = vmatpush.xpose.msra.mxu0 0.0
      %1005 = vmatpush.xpose.msra.mxu0 0.0
      %1006 = vmatpush.xpose.msra.mxu0 0.0
      %1007 = vmatpush.xpose.msra.mxu0 0.0
      %1008 = vmatpush.xpose.msra.mxu0 0.0
      %1009 = vmatpush.xpose.msra.mxu0 0.0
      %1010 = vmatpush.xpose.msra.mxu0 0.0
      %1011 = vmatpush.xpose.msra.mxu0 0.0
      %1012 = vmatpush.xpose.msra.mxu0 0.0
      %1013 = vmatpush.xpose.msra.mxu0 0.0
      %1014 = vmatpush.xpose.msra.mxu0 0.0
      %1015 = vmatpush.xpose.msra.mxu0 0.0
      %1016 = vmatpush.xpose.msra.mxu0 0.0
      %1017 = vmatpush.xpose.msra.mxu0 %v505
      %1018 = vmatmul.f32.gmra.mxu0 %v392
      %v1019 = vpop.f32.mrf.mxu0
      %v1020 = vadd.f32 0.0, %v1019
      %1021 = vdwg.mxu0
      %1022 = vmatpush.xpose.msra.mxu0 0.0
      %1023 = vmatpush.xpose.msra.mxu0 0.0
      %1024 = vmatpush.xpose.msra.mxu0 0.0
      %1025 = vmatpush.xpose.msra.mxu0 0.0
      %1026 = vmatpush.xpose.msra.mxu0 0.0
      %1027 = vmatpush.xpose.msra.mxu0 0.0
      %1028 = vmatpush.xpose.msra.mxu0 0.0
      %1029 = vmatpush.xpose.msra.mxu0 0.0
      %1030 = vmatpush.xpose.msra.mxu0 0.0
      %1031 = vmatpush.xpose.msra.mxu0 0.0
      %1032 = vmatpush.xpose.msra.mxu0 0.0
      %1033 = vmatpush.xpose.msra.mxu0 0.0
      %1034 = vmatpush.xpose.msra.mxu0 0.0
      %1035 = vmatpush.xpose.msra.mxu0 0.0
      %1036 = vmatpush.xpose.msra.mxu0 0.0
      %1037 = vmatpush.xpose.msra.mxu0 %v508
      %1038 = vmatmul.f32.gmra.mxu0 %v395
      %v1039 = vpop.f32.mrf.mxu0
      %v1040 = vadd.f32 0.0, %v1039
      %1041 = vdwg.mxu0
      %1042 = vmatpush.xpose.msra.mxu0 0.0
      %1043 = vmatpush.xpose.msra.mxu0 0.0
      %1044 = vmatpush.xpose.msra.mxu0 0.0
      %1045 = vmatpush.xpose.msra.mxu0 0.0
      %1046 = vmatpush.xpose.msra.mxu0 0.0
      %1047 = vmatpush.xpose.msra.mxu0 0.0
      %1048 = vmatpush.xpose.msra.mxu0 0.0
      %1049 = vmatpush.xpose.msra.mxu0 0.0
      %1050 = vmatpush.xpose.msra.mxu0 0.0
      %1051 = vmatpush.xpose.msra.mxu0 0.0
      %1052 = vmatpush.xpose.msra.mxu0 0.0
      %1053 = vmatpush.xpose.msra.mxu0 0.0
      %1054 = vmatpush.xpose.msra.mxu0 0.0
      %1055 = vmatpush.xpose.msra.mxu0 0.0
      %1056 = vmatpush.xpose.msra.mxu0 0.0
      %1057 = vmatpush.xpose.msra.mxu0 %v511
      %1058 = vmatmul.f32.gmra.mxu0 %v398
      %v1059 = vpop.f32.mrf.mxu0
      %v1060 = vadd.f32 0.0, %v1059
      %1061 = vdwg.mxu0
      %1062 = vmatpush.xpose.msra.mxu0 0.0
      %1063 = vmatpush.xpose.msra.mxu0 0.0
      %1064 = vmatpush.xpose.msra.mxu0 0.0
      %1065 = vmatpush.xpose.msra.mxu0 0.0
      %1066 = vmatpush.xpose.msra.mxu0 0.0
      %1067 = vmatpush.xpose.msra.mxu0 0.0
      %1068 = vmatpush.xpose.msra.mxu0 0.0
      %1069 = vmatpush.xpose.msra.mxu0 0.0
      %1070 = vmatpush.xpose.msra.mxu0 0.0
      %1071 = vmatpush.xpose.msra.mxu0 0.0
      %1072 = vmatpush.xpose.msra.mxu0 0.0
      %1073 = vmatpush.xpose.msra.mxu0 0.0
      %1074 = vmatpush.xpose.msra.mxu0 0.0
      %1075 = vmatpush.xpose.msra.mxu0 0.0
      %1076 = vmatpush.xpose.msra.mxu0 0.0
      %1077 = vmatpush.xpose.msra.mxu0 %v514
      %1078 = vmatmul.f32.gmra.mxu0 %v401
      %v1079 = vpop.f32.mrf.mxu0
      %v1080 = vadd.f32 0.0, %v1079
      %1081 = vdwg.mxu0
      %1082 = vmatpush.xpose.msra.mxu0 0.0
      %1083 = vmatpush.xpose.msra.mxu0 0.0
      %1084 = vmatpush.xpose.msra.mxu0 0.0
      %1085 = vmatpush.xpose.msra.mxu0 0.0
      %1086 = vmatpush.xpose.msra.mxu0 0.0
      %1087 = vmatpush.xpose.msra.mxu0 0.0
      %1088 = vmatpush.xpose.msra.mxu0 0.0
      %1089 = vmatpush.xpose.msra.mxu0 0.0
      %1090 = vmatpush.xpose.msra.mxu0 0.0
      %1091 = vmatpush.xpose.msra.mxu0 0.0
      %1092 = vmatpush.xpose.msra.mxu0 0.0
      %1093 = vmatpush.xpose.msra.mxu0 0.0
      %1094 = vmatpush.xpose.msra.mxu0 0.0
      %1095 = vmatpush.xpose.msra.mxu0 0.0
      %1096 = vmatpush.xpose.msra.mxu0 0.0
      %1097 = vmatpush.xpose.msra.mxu0 %v517
      %1098 = vmatmul.f32.gmra.mxu0 %v404
      %v1099 = vpop.f32.mrf.mxu0
      %v1100 = vadd.f32 0.0, %v1099
      %1101 = vdwg.mxu0
      %1102 = vmatpush.xpose.msra.mxu0 0.0
      %1103 = vmatpush.xpose.msra.mxu0 0.0
      %1104 = vmatpush.xpose.msra.mxu0 0.0
      %1105 = vmatpush.xpose.msra.mxu0 0.0
      %1106 = vmatpush.xpose.msra.mxu0 0.0
      %1107 = vmatpush.xpose.msra.mxu0 0.0
      %1108 = vmatpush.xpose.msra.mxu0 0.0
      %1109 = vmatpush.xpose.msra.mxu0 0.0
      %1110 = vmatpush.xpose.msra.mxu0 0.0
      %1111 = vmatpush.xpose.msra.mxu0 0.0
      %1112 = vmatpush.xpose.msra.mxu0 0.0
      %1113 = vmatpush.xpose.msra.mxu0 0.0
      %1114 = vmatpush.xpose.msra.mxu0 0.0
      %1115 = vmatpush.xpose.msra.mxu0 0.0
      %1116 = vmatpush.xpose.msra.mxu0 0.0
      %1117 = vmatpush.xpose.msra.mxu0 %v520
      %1118 = vmatmul.f32.gmra.mxu0 %v407
      %v1119 = vpop.f32.mrf.mxu0
      %v1120 = vadd.f32 0.0, %v1119
      %1121 = vdwg.mxu0
      %1122 = vmatpush.xpose.msra.mxu0 0.0
      %1123 = vmatpush.xpose.msra.mxu0 0.0
      %1124 = vmatpush.xpose.msra.mxu0 0.0
      %1125 = vmatpush.xpose.msra.mxu0 0.0
      %1126 = vmatpush.xpose.msra.mxu0 0.0
      %1127 = vmatpush.xpose.msra.mxu0 0.0
      %1128 = vmatpush.xpose.msra.mxu0 0.0
      %1129 = vmatpush.xpose.msra.mxu0 0.0
      %1130 = vmatpush.xpose.msra.mxu0 0.0
      %1131 = vmatpush.xpose.msra.mxu0 0.0
      %1132 = vmatpush.xpose.msra.mxu0 0.0
      %1133 = vmatpush.xpose.msra.mxu0 0.0
      %1134 = vmatpush.xpose.msra.mxu0 0.0
      %1135 = vmatpush.xpose.msra.mxu0 0.0
      %1136 = vmatpush.xpose.msra.mxu0 0.0
      %1137 = vmatpush.xpose.msra.mxu0 %v523
      %1138 = vmatmul.f32.gmra.mxu0 %v410
      %v1139 = vpop.f32.mrf.mxu0
      %v1140 = vadd.f32 0.0, %v1139
      %1141 = vdwg.mxu0
      %1142 = vmatpush.xpose.msra.mxu0 0.0
      %1143 = vmatpush.xpose.msra.mxu0 0.0
      %1144 = vmatpush.xpose.msra.mxu0 0.0
      %1145 = vmatpush.xpose.msra.mxu0 0.0
      %1146 = vmatpush.xpose.msra.mxu0 0.0
      %1147 = vmatpush.xpose.msra.mxu0 0.0
      %1148 = vmatpush.xpose.msra.mxu0 0.0
      %1149 = vmatpush.xpose.msra.mxu0 0.0
      %1150 = vmatpush.xpose.msra.mxu0 0.0
      %1151 = vmatpush.xpose.msra.mxu0 0.0
      %1152 = vmatpush.xpose.msra.mxu0 0.0
      %1153 = vmatpush.xpose.msra.mxu0 0.0
      %1154 = vmatpush.xpose.msra.mxu0 0.0
      %1155 = vmatpush.xpose.msra.mxu0 0.0
      %1156 = vmatpush.xpose.msra.mxu0 0.0
      %1157 = vmatpush.xpose.msra.mxu0 %v526
      %1158 = vmatmul.f32.gmra.mxu0 %v413
      %v1159 = vpop.f32.mrf.mxu0
      %v1160 = vadd.f32 0.0, %v1159
      %1161 = vdwg.mxu0
      %1162 = vmatpush.xpose.msra.mxu0 0.0
      %1163 = vmatpush.xpose.msra.mxu0 0.0
      %1164 = vmatpush.xpose.msra.mxu0 0.0
      %1165 = vmatpush.xpose.msra.mxu0 0.0
      %1166 = vmatpush.xpose.msra.mxu0 0.0
      %1167 = vmatpush.xpose.msra.mxu0 0.0
      %1168 = vmatpush.xpose.msra.mxu0 0.0
      %1169 = vmatpush.xpose.msra.mxu0 0.0
      %1170 = vmatpush.xpose.msra.mxu0 0.0
      %1171 = vmatpush.xpose.msra.mxu0 0.0
      %1172 = vmatpush.xpose.msra.mxu0 0.0
      %1173 = vmatpush.xpose.msra.mxu0 0.0
      %1174 = vmatpush.xpose.msra.mxu0 0.0
      %1175 = vmatpush.xpose.msra.mxu0 0.0
      %1176 = vmatpush.xpose.msra.mxu0 0.0
      %1177 = vmatpush.xpose.msra.mxu0 %v529
      %1178 = vmatmul.f32.gmra.mxu0 %v416
      %v1179 = vpop.f32.mrf.mxu0
      %v1180 = vadd.f32 0.0, %v1179
      %1181 = vdwg.mxu0
      %1182 = vmatpush.xpose.msra.mxu0 0.0
      %1183 = vmatpush.xpose.msra.mxu0 0.0
      %1184 = vmatpush.xpose.msra.mxu0 0.0
      %1185 = vmatpush.xpose.msra.mxu0 0.0
      %1186 = vmatpush.xpose.msra.mxu0 0.0
      %1187 = vmatpush.xpose.msra.mxu0 0.0
      %1188 = vmatpush.xpose.msra.mxu0 0.0
      %1189 = vmatpush.xpose.msra.mxu0 0.0
      %1190 = vmatpush.xpose.msra.mxu0 0.0
      %1191 = vmatpush.xpose.msra.mxu0 0.0
      %1192 = vmatpush.xpose.msra.mxu0 0.0
      %1193 = vmatpush.xpose.msra.mxu0 0.0
      %1194 = vmatpush.xpose.msra.mxu0 0.0
      %1195 = vmatpush.xpose.msra.mxu0 0.0
      %1196 = vmatpush.xpose.msra.mxu0 0.0
      %1197 = vmatpush.xpose.msra.mxu0 %v532
      %1198 = vmatmul.f32.gmra.mxu0 %v419
      %v1199 = vpop.f32.mrf.mxu0
      %v1200 = vadd.f32 0.0, %v1199
      %1201 = vdwg.mxu0
      %1202 = vmatpush.xpose.msra.mxu0 0.0
      %1203 = vmatpush.xpose.msra.mxu0 0.0
      %1204 = vmatpush.xpose.msra.mxu0 0.0
      %1205 = vmatpush.xpose.msra.mxu0 0.0
      %1206 = vmatpush.xpose.msra.mxu0 0.0
      %1207 = vmatpush.xpose.msra.mxu0 0.0
      %1208 = vmatpush.xpose.msra.mxu0 0.0
      %1209 = vmatpush.xpose.msra.mxu0 0.0
      %1210 = vmatpush.xpose.msra.mxu0 0.0
      %1211 = vmatpush.xpose.msra.mxu0 0.0
      %1212 = vmatpush.xpose.msra.mxu0 0.0
      %1213 = vmatpush.xpose.msra.mxu0 0.0
      %1214 = vmatpush.xpose.msra.mxu0 0.0
      %1215 = vmatpush.xpose.msra.mxu0 0.0
      %1216 = vmatpush.xpose.msra.mxu0 0.0
      %1217 = vmatpush.xpose.msra.mxu0 %v535
      %1218 = vmatmul.f32.gmra.mxu0 %v422
      %v1219 = vpop.f32.mrf.mxu0
      %v1220 = vadd.f32 0.0, %v1219
      %1221 = vdwg.mxu0
      %1222 = vmatpush.xpose.msra.mxu0 0.0
      %1223 = vmatpush.xpose.msra.mxu0 0.0
      %1224 = vmatpush.xpose.msra.mxu0 0.0
      %1225 = vmatpush.xpose.msra.mxu0 0.0
      %1226 = vmatpush.xpose.msra.mxu0 0.0
      %1227 = vmatpush.xpose.msra.mxu0 0.0
      %1228 = vmatpush.xpose.msra.mxu0 0.0
      %1229 = vmatpush.xpose.msra.mxu0 0.0
      %1230 = vmatpush.xpose.msra.mxu0 0.0
      %1231 = vmatpush.xpose.msra.mxu0 0.0
      %1232 = vmatpush.xpose.msra.mxu0 0.0
      %1233 = vmatpush.xpose.msra.mxu0 0.0
      %1234 = vmatpush.xpose.msra.mxu0 0.0
      %1235 = vmatpush.xpose.msra.mxu0 0.0
      %1236 = vmatpush.xpose.msra.mxu0 0.0
      %1237 = vmatpush.xpose.msra.mxu0 %v538
      %1238 = vmatmul.f32.gmra.mxu0 %v425
      %v1239 = vpop.f32.mrf.mxu0
      %v1240 = vadd.f32 0.0, %v1239
      %1241 = vdwg.mxu0
      %1242 = vmatpush.xpose.msra.mxu0 0.0
      %1243 = vmatpush.xpose.msra.mxu0 0.0
      %1244 = vmatpush.xpose.msra.mxu0 0.0
      %1245 = vmatpush.xpose.msra.mxu0 0.0
      %1246 = vmatpush.xpose.msra.mxu0 0.0
      %1247 = vmatpush.xpose.msra.mxu0 0.0
      %1248 = vmatpush.xpose.msra.mxu0 0.0
      %1249 = vmatpush.xpose.msra.mxu0 0.0
      %1250 = vmatpush.xpose.msra.mxu0 0.0
      %1251 = vmatpush.xpose.msra.mxu0 0.0
      %1252 = vmatpush.xpose.msra.mxu0 0.0
      %1253 = vmatpush.xpose.msra.mxu0 0.0
      %1254 = vmatpush.xpose.msra.mxu0 0.0
      %1255 = vmatpush.xpose.msra.mxu0 0.0
      %1256 = vmatpush.xpose.msra.mxu0 0.0
      %1257 = vmatpush.xpose.msra.mxu0 %v541
      %1258 = vmatmul.f32.gmra.mxu0 %v428
      %v1259 = vpop.f32.mrf.mxu0
      %v1260 = vadd.f32 0.0, %v1259
      %1261 = vdwg.mxu0
      %1262 = vmatpush.xpose.msra.mxu0 0.0
      %1263 = vmatpush.xpose.msra.mxu0 0.0
      %1264 = vmatpush.xpose.msra.mxu0 0.0
      %1265 = vmatpush.xpose.msra.mxu0 0.0
      %1266 = vmatpush.xpose.msra.mxu0 0.0
      %1267 = vmatpush.xpose.msra.mxu0 0.0
      %1268 = vmatpush.xpose.msra.mxu0 0.0
      %1269 = vmatpush.xpose.msra.mxu0 0.0
      %1270 = vmatpush.xpose.msra.mxu0 0.0
      %1271 = vmatpush.xpose.msra.mxu0 0.0
      %1272 = vmatpush.xpose.msra.mxu0 0.0
      %1273 = vmatpush.xpose.msra.mxu0 0.0
      %1274 = vmatpush.xpose.msra.mxu0 0.0
      %1275 = vmatpush.xpose.msra.mxu0 0.0
      %1276 = vmatpush.xpose.msra.mxu0 0.0
      %1277 = vmatpush.xpose.msra.mxu0 %v544
      %1278 = vmatmul.f32.gmra.mxu0 %v431
      %v1279 = vpop.f32.mrf.mxu0
      %v1280 = vadd.f32 0.0, %v1279
      %1281 = vdwg.mxu0
      %1282 = vmatpush.xpose.msra.mxu0 0.0
      %1283 = vmatpush.xpose.msra.mxu0 0.0
      %1284 = vmatpush.xpose.msra.mxu0 0.0
      %1285 = vmatpush.xpose.msra.mxu0 0.0
      %1286 = vmatpush.xpose.msra.mxu0 0.0
      %1287 = vmatpush.xpose.msra.mxu0 0.0
      %1288 = vmatpush.xpose.msra.mxu0 0.0
      %1289 = vmatpush.xpose.msra.mxu0 0.0
      %1290 = vmatpush.xpose.msra.mxu0 0.0
      %1291 = vmatpush.xpose.msra.mxu0 0.0
      %1292 = vmatpush.xpose.msra.mxu0 0.0
      %1293 = vmatpush.xpose.msra.mxu0 0.0
      %1294 = vmatpush.xpose.msra.mxu0 0.0
      %1295 = vmatpush.xpose.msra.mxu0 0.0
      %1296 = vmatpush.xpose.msra.mxu0 0.0
      %1297 = vmatpush.xpose.msra.mxu0 %v547
      %1298 = vmatmul.f32.gmra.mxu0 %v434
      %v1299 = vpop.f32.mrf.mxu0
      %v1300 = vadd.f32 0.0, %v1299
      %1301 = vdwg.mxu0
      %vm1302 = vcmask 64512
      %v1303 = vsel %vm1302, %v680, -inf
      %1304 = vmax.xlane.f32.xlu0 %v1303
      %v1305 = vpop.xlane.xlu0 %1304
      %v1306 = vsel %vm1302, %v700, -inf
      %1307 = vmax.xlane.f32.xlu0 %v1306
      %v1308 = vpop.xlane.xlu0 %1307
      %v1309 = vsel %vm1302, %v720, -inf
      %1310 = vmax.xlane.f32.xlu0 %v1309
      %v1311 = vpop.xlane.xlu0 %1310
      %v1312 = vsel %vm1302, %v740, -inf
      %1313 = vmax.xlane.f32.xlu0 %v1312
      %v1314 = vpop.xlane.xlu0 %1313
      %v1315 = vsel %vm1302, %v760, -inf
      %1316 = vmax.xlane.f32.xlu0 %v1315
      %v1317 = vpop.xlane.xlu0 %1316
      %v1318 = vsel %vm1302, %v780, -inf
      %1319 = vmax.xlane.f32.xlu0 %v1318
      %v1320 = vpop.xlane.xlu0 %1319
      %v1321 = vsel %vm1302, %v800, -inf
      %1322 = vmax.xlane.f32.xlu0 %v1321
      %v1323 = vpop.xlane.xlu0 %1322
      %v1324 = vsel %vm1302, %v820, -inf
      %1325 = vmax.xlane.f32.xlu0 %v1324
      %v1326 = vpop.xlane.xlu0 %1325
      %v1327 = vsel %vm1302, %v840, -inf
      %1328 = vmax.xlane.f32.xlu0 %v1327
      %v1329 = vpop.xlane.xlu0 %1328
      %v1330 = vsel %vm1302, %v860, -inf
      %1331 = vmax.xlane.f32.xlu0 %v1330
      %v1332 = vpop.xlane.xlu0 %1331
      %v1333 = vsel %vm1302, %v880, -inf
      %1334 = vmax.xlane.f32.xlu0 %v1333
      %v1335 = vpop.xlane.xlu0 %1334
      %v1336 = vsel %vm1302, %v900, -inf
      %1337 = vmax.xlane.f32.xlu0 %v1336
      %v1338 = vpop.xlane.xlu0 %1337
      %v1339 = vsel %vm1302, %v920, -inf
      %1340 = vmax.xlane.f32.xlu0 %v1339
      %v1341 = vpop.xlane.xlu0 %1340
      %v1342 = vsel %vm1302, %v940, -inf
      %1343 = vmax.xlane.f32.xlu0 %v1342
      %v1344 = vpop.xlane.xlu0 %1343
      %v1345 = vsel %vm1302, %v960, -inf
      %1346 = vmax.xlane.f32.xlu0 %v1345
      %v1347 = vpop.xlane.xlu0 %1346
      %v1348 = vsel %vm1302, %v980, -inf
      %1349 = vmax.xlane.f32.xlu0 %v1348
      %v1350 = vpop.xlane.xlu0 %1349
      %v1351 = vsel %vm1302, %v1000, -inf
      %1352 = vmax.xlane.f32.xlu0 %v1351
      %v1353 = vpop.xlane.xlu0 %1352
      %v1354 = vsel %vm1302, %v1020, -inf
      %1355 = vmax.xlane.f32.xlu0 %v1354
      %v1356 = vpop.xlane.xlu0 %1355
      %v1357 = vsel %vm1302, %v1040, -inf
      %1358 = vmax.xlane.f32.xlu0 %v1357
      %v1359 = vpop.xlane.xlu0 %1358
      %v1360 = vsel %vm1302, %v1060, -inf
      %1361 = vmax.xlane.f32.xlu0 %v1360
      %v1362 = vpop.xlane.xlu0 %1361
      %v1363 = vsel %vm1302, %v1080, -inf
      %1364 = vmax.xlane.f32.xlu0 %v1363
      %v1365 = vpop.xlane.xlu0 %1364
      %v1366 = vsel %vm1302, %v1100, -inf
      %1367 = vmax.xlane.f32.xlu0 %v1366
      %v1368 = vpop.xlane.xlu0 %1367
      %v1369 = vsel %vm1302, %v1120, -inf
      %1370 = vmax.xlane.f32.xlu0 %v1369
      %v1371 = vpop.xlane.xlu0 %1370
      %v1372 = vsel %vm1302, %v1140, -inf
      %1373 = vmax.xlane.f32.xlu0 %v1372
      %v1374 = vpop.xlane.xlu0 %1373
      %v1375 = vsel %vm1302, %v1160, -inf
      %1376 = vmax.xlane.f32.xlu0 %v1375
      %v1377 = vpop.xlane.xlu0 %1376
      %v1378 = vsel %vm1302, %v1180, -inf
      %1379 = vmax.xlane.f32.xlu0 %v1378
      %v1380 = vpop.xlane.xlu0 %1379
      %v1381 = vsel %vm1302, %v1200, -inf
      %1382 = vmax.xlane.f32.xlu0 %v1381
      %v1383 = vpop.xlane.xlu0 %1382
      %v1384 = vsel %vm1302, %v1220, -inf
      %1385 = vmax.xlane.f32.xlu0 %v1384
      %v1386 = vpop.xlane.xlu0 %1385
      %v1387 = vsel %vm1302, %v1240, -inf
      %1388 = vmax.xlane.f32.xlu0 %v1387
      %v1389 = vpop.xlane.xlu0 %1388
      %v1390 = vsel %vm1302, %v1260, -inf
      %1391 = vmax.xlane.f32.xlu0 %v1390
      %v1392 = vpop.xlane.xlu0 %1391
      %v1393 = vsel %vm1302, %v1280, -inf
      %1394 = vmax.xlane.f32.xlu0 %v1393
      %v1395 = vpop.xlane.xlu0 %1394
      %v1396 = vsel %vm1302, %v1300, -inf
      %1397 = vmax.xlane.f32.xlu0 %v1396
      %v1398 = vpop.xlane.xlu0 %1397
      %v1399 = vsub.f32 %v680, %v1305
      %v1400 = vsub.f32 %v700, %v1308
      %v1401 = vsub.f32 %v720, %v1311
      %v1402 = vsub.f32 %v740, %v1314
      %v1403 = vsub.f32 %v760, %v1317
      %v1404 = vsub.f32 %v780, %v1320
      %v1405 = vsub.f32 %v800, %v1323
      %v1406 = vsub.f32 %v820, %v1326
      %v1407 = vsub.f32 %v840, %v1329
      %v1408 = vsub.f32 %v860, %v1332
      %v1409 = vsub.f32 %v880, %v1335
      %v1410 = vsub.f32 %v900, %v1338
      %v1411 = vsub.f32 %v920, %v1341
      %v1412 = vsub.f32 %v940, %v1344
      %v1413 = vsub.f32 %v960, %v1347
      %v1414 = vsub.f32 %v980, %v1350
      %v1415 = vsub.f32 %v1000, %v1353
      %v1416 = vsub.f32 %v1020, %v1356
      %v1417 = vsub.f32 %v1040, %v1359
      %v1418 = vsub.f32 %v1060, %v1362
      %v1419 = vsub.f32 %v1080, %v1365
      %v1420 = vsub.f32 %v1100, %v1368
      %v1421 = vsub.f32 %v1120, %v1371
      %v1422 = vsub.f32 %v1140, %v1374
      %v1423 = vsub.f32 %v1160, %v1377
      %v1424 = vsub.f32 %v1180, %v1380
      %v1425 = vsub.f32 %v1200, %v1383
      %v1426 = vsub.f32 %v1220, %v1386
      %v1427 = vsub.f32 %v1240, %v1389
      %v1428 = vsub.f32 %v1260, %v1392
      %v1429 = vsub.f32 %v1280, %v1395
      %v1430 = vsub.f32 %v1300, %v1398
      %v1431 = vmul.f32 %v1399, 1.442695
      %v1432 = vpow.pop %v1431
      %v1433 = vmul.f32 %v1400, 1.442695
      %v1434 = vpow.pop %v1433
      %v1435 = vmul.f32 %v1401, 1.442695
      %v1436 = vpow.pop %v1435
      %v1437 = vmul.f32 %v1402, 1.442695
      %v1438 = vpow.pop %v1437
      %v1439 = vmul.f32 %v1403, 1.442695
      %v1440 = vpow.pop %v1439
      %v1441 = vmul.f32 %v1404, 1.442695
      %v1442 = vpow.pop %v1441
      %v1443 = vmul.f32 %v1405, 1.442695
      %v1444 = vpow.pop %v1443
      %v1445 = vmul.f32 %v1406, 1.442695
      %v1446 = vpow.pop %v1445
      %v1447 = vmul.f32 %v1407, 1.442695
      %v1448 = vpow.pop %v1447
      %v1449 = vmul.f32 %v1408, 1.442695
      %v1450 = vpow.pop %v1449
      %v1451 = vmul.f32 %v1409, 1.442695
      %v1452 = vpow.pop %v1451
      %v1453 = vmul.f32 %v1410, 1.442695
      %v1454 = vpow.pop %v1453
      %v1455 = vmul.f32 %v1411, 1.442695
      %v1456 = vpow.pop %v1455
      %v1457 = vmul.f32 %v1412, 1.442695
      %v1458 = vpow.pop %v1457
      %v1459 = vmul.f32 %v1413, 1.442695
      %v1460 = vpow.pop %v1459
      %v1461 = vmul.f32 %v1414, 1.442695
      %v1462 = vpow.pop %v1461
      %v1463 = vmul.f32 %v1415, 1.442695
      %v1464 = vpow.pop %v1463
      %v1465 = vmul.f32 %v1416, 1.442695
      %v1466 = vpow.pop %v1465
      %v1467 = vmul.f32 %v1417, 1.442695
      %v1468 = vpow.pop %v1467
      %v1469 = vmul.f32 %v1418, 1.442695
      %v1470 = vpow.pop %v1469
      %v1471 = vmul.f32 %v1419, 1.442695
      %v1472 = vpow.pop %v1471
      %v1473 = vmul.f32 %v1420, 1.442695
      %v1474 = vpow.pop %v1473
      %v1475 = vmul.f32 %v1421, 1.442695
      %v1476 = vpow.pop %v1475
      %v1477 = vmul.f32 %v1422, 1.442695
      %v1478 = vpow.pop %v1477
      %v1479 = vmul.f32 %v1423, 1.442695
      %v1480 = vpow.pop %v1479
      %v1481 = vmul.f32 %v1424, 1.442695
      %v1482 = vpow.pop %v1481
      %v1483 = vmul.f32 %v1425, 1.442695
      %v1484 = vpow.pop %v1483
      %v1485 = vmul.f32 %v1426, 1.442695
      %v1486 = vpow.pop %v1485
      %v1487 = vmul.f32 %v1427, 1.442695
      %v1488 = vpow.pop %v1487
      %v1489 = vmul.f32 %v1428, 1.442695
      %v1490 = vpow.pop %v1489
      %v1491 = vmul.f32 %v1429, 1.442695
      %v1492 = vpow.pop %v1491
      %v1493 = vmul.f32 %v1430, 1.442695
      %v1494 = vpow.pop %v1493
      %v1495 = vsel %vm1302, %v1432, 0.0
      %1496 = vadd.xlane.f32.xlu0 %v1495
      %v1497 = vpop.xlane.xlu0 %1496
      %v1498 = vsel %vm1302, %v1434, 0.0
      %1499 = vadd.xlane.f32.xlu0 %v1498
      %v1500 = vpop.xlane.xlu0 %1499
      %v1501 = vsel %vm1302, %v1436, 0.0
      %1502 = vadd.xlane.f32.xlu0 %v1501
      %v1503 = vpop.xlane.xlu0 %1502
      %v1504 = vsel %vm1302, %v1438, 0.0
      %1505 = vadd.xlane.f32.xlu0 %v1504
      %v1506 = vpop.xlane.xlu0 %1505
      %v1507 = vsel %vm1302, %v1440, 0.0
      %1508 = vadd.xlane.f32.xlu0 %v1507
      %v1509 = vpop.xlane.xlu0 %1508
      %v1510 = vsel %vm1302, %v1442, 0.0
      %1511 = vadd.xlane.f32.xlu0 %v1510
      %v1512 = vpop.xlane.xlu0 %1511
      %v1513 = vsel %vm1302, %v1444, 0.0
      %1514 = vadd.xlane.f32.xlu0 %v1513
      %v1515 = vpop.xlane.xlu0 %1514
      %v1516 = vsel %vm1302, %v1446, 0.0
      %1517 = vadd.xlane.f32.xlu0 %v1516
      %v1518 = vpop.xlane.xlu0 %1517
      %v1519 = vsel %vm1302, %v1448, 0.0
      %1520 = vadd.xlane.f32.xlu0 %v1519
      %v1521 = vpop.xlane.xlu0 %1520
      %v1522 = vsel %vm1302, %v1450, 0.0
      %1523 = vadd.xlane.f32.xlu0 %v1522
      %v1524 = vpop.xlane.xlu0 %1523
      %v1525 = vsel %vm1302, %v1452, 0.0
      %1526 = vadd.xlane.f32.xlu0 %v1525
      %v1527 = vpop.xlane.xlu0 %1526
      %v1528 = vsel %vm1302, %v1454, 0.0
      %1529 = vadd.xlane.f32.xlu0 %v1528
      %v1530 = vpop.xlane.xlu0 %1529
      %v1531 = vsel %vm1302, %v1456, 0.0
      %1532 = vadd.xlane.f32.xlu0 %v1531
      %v1533 = vpop.xlane.xlu0 %1532
      %v1534 = vsel %vm1302, %v1458, 0.0
      %1535 = vadd.xlane.f32.xlu0 %v1534
      %v1536 = vpop.xlane.xlu0 %1535
      %v1537 = vsel %vm1302, %v1460, 0.0
      %1538 = vadd.xlane.f32.xlu0 %v1537
      %v1539 = vpop.xlane.xlu0 %1538
      %v1540 = vsel %vm1302, %v1462, 0.0
      %1541 = vadd.xlane.f32.xlu0 %v1540
      %v1542 = vpop.xlane.xlu0 %1541
      %v1543 = vsel %vm1302, %v1464, 0.0
      %1544 = vadd.xlane.f32.xlu0 %v1543
      %v1545 = vpop.xlane.xlu0 %1544
      %v1546 = vsel %vm1302, %v1466, 0.0
      %1547 = vadd.xlane.f32.xlu0 %v1546
      %v1548 = vpop.xlane.xlu0 %1547
      %v1549 = vsel %vm1302, %v1468, 0.0
      %1550 = vadd.xlane.f32.xlu0 %v1549
      %v1551 = vpop.xlane.xlu0 %1550
      %v1552 = vsel %vm1302, %v1470, 0.0
      %1553 = vadd.xlane.f32.xlu0 %v1552
      %v1554 = vpop.xlane.xlu0 %1553
      %v1555 = vsel %vm1302, %v1472, 0.0
      %1556 = vadd.xlane.f32.xlu0 %v1555
      %v1557 = vpop.xlane.xlu0 %1556
      %v1558 = vsel %vm1302, %v1474, 0.0
      %1559 = vadd.xlane.f32.xlu0 %v1558
      %v1560 = vpop.xlane.xlu0 %1559
      %v1561 = vsel %vm1302, %v1476, 0.0
      %1562 = vadd.xlane.f32.xlu0 %v1561
      %v1563 = vpop.xlane.xlu0 %1562
      %v1564 = vsel %vm1302, %v1478, 0.0
      %1565 = vadd.xlane.f32.xlu0 %v1564
      %v1566 = vpop.xlane.xlu0 %1565
      %v1567 = vsel %vm1302, %v1480, 0.0
      %1568 = vadd.xlane.f32.xlu0 %v1567
      %v1569 = vpop.xlane.xlu0 %1568
      %v1570 = vsel %vm1302, %v1482, 0.0
      %1571 = vadd.xlane.f32.xlu0 %v1570
      %v1572 = vpop.xlane.xlu0 %1571
      %v1573 = vsel %vm1302, %v1484, 0.0
      %1574 = vadd.xlane.f32.xlu0 %v1573
      %v1575 = vpop.xlane.xlu0 %1574
      %v1576 = vsel %vm1302, %v1486, 0.0
      %1577 = vadd.xlane.f32.xlu0 %v1576
      %v1578 = vpop.xlane.xlu0 %1577
      %v1579 = vsel %vm1302, %v1488, 0.0
      %1580 = vadd.xlane.f32.xlu0 %v1579
      %v1581 = vpop.xlane.xlu0 %1580
      %v1582 = vsel %vm1302, %v1490, 0.0
      %1583 = vadd.xlane.f32.xlu0 %v1582
      %v1584 = vpop.xlane.xlu0 %1583
      %v1585 = vsel %vm1302, %v1492, 0.0
      %1586 = vadd.xlane.f32.xlu0 %v1585
      %v1587 = vpop.xlane.xlu0 %1586
      %v1588 = vsel %vm1302, %v1494, 0.0
      %1589 = vadd.xlane.f32.xlu0 %v1588
      %v1590 = vpop.xlane.xlu0 %1589
      %v1591 = vrcp.pop %v1497
      %v1592 = vmul.f32 %v1497, %v1591
      %v1593 = vsub.f32 1.0, %v1592
      %v1594 = vmul.f32 %v1591, %v1593
      %v1595 = vadd.f32 %v1591, %v1594
      %vm1596 = vweird.f32 %v1497
      %vm1597 = vweird.f32 %v1591
      %vm1598 = vmor %vm1596, %vm1597
      %v1599 = vsel %vm1598, %v1591, %v1595
      %v1600 = vand.u32 2147483647, %v1497
      %vm1601 = vcmp.eq.f32.partialorder %v1600, 8.507059e+37
      %v1602 = vand.u32 %v1497, 2147483648
      %v1603 = vor.u32 1.1754944e-38, %v1602
      %v1604 = vsel %vm1601, %v1603, %v1599
      %v1605 = vrcp.pop %v1500
      %v1606 = vmul.f32 %v1500, %v1605
      %v1607 = vsub.f32 1.0, %v1606
      %v1608 = vmul.f32 %v1605, %v1607
      %v1609 = vadd.f32 %v1605, %v1608
      %vm1610 = vweird.f32 %v1500
      %vm1611 = vweird.f32 %v1605
      %vm1612 = vmor %vm1610, %vm1611
      %v1613 = vsel %vm1612, %v1605, %v1609
      %v1614 = vand.u32 2147483647, %v1500
      %vm1615 = vcmp.eq.f32.partialorder %v1614, 8.507059e+37
      %v1616 = vand.u32 %v1500, 2147483648
      %v1617 = vor.u32 1.1754944e-38, %v1616
      %v1618 = vsel %vm1615, %v1617, %v1613
      %v1619 = vrcp.pop %v1503
      %v1620 = vmul.f32 %v1503, %v1619
      %v1621 = vsub.f32 1.0, %v1620
      %v1622 = vmul.f32 %v1619, %v1621
      %v1623 = vadd.f32 %v1619, %v1622
      %vm1624 = vweird.f32 %v1503
      %vm1625 = vweird.f32 %v1619
      %vm1626 = vmor %vm1624, %vm1625
      %v1627 = vsel %vm1626, %v1619, %v1623
      %v1628 = vand.u32 2147483647, %v1503
      %vm1629 = vcmp.eq.f32.partialorder %v1628, 8.507059e+37
      %v1630 = vand.u32 %v1503, 2147483648
      %v1631 = vor.u32 1.1754944e-38, %v1630
      %v1632 = vsel %vm1629, %v1631, %v1627
      %v1633 = vrcp.pop %v1506
      %v1634 = vmul.f32 %v1506, %v1633
      %v1635 = vsub.f32 1.0, %v1634
      %v1636 = vmul.f32 %v1633, %v1635
      %v1637 = vadd.f32 %v1633, %v1636
      %vm1638 = vweird.f32 %v1506
      %vm1639 = vweird.f32 %v1633
      %vm1640 = vmor %vm1638, %vm1639
      %v1641 = vsel %vm1640, %v1633, %v1637
      %v1642 = vand.u32 2147483647, %v1506
      %vm1643 = vcmp.eq.f32.partialorder %v1642, 8.507059e+37
      %v1644 = vand.u32 %v1506, 2147483648
      %v1645 = vor.u32 1.1754944e-38, %v1644
      %v1646 = vsel %vm1643, %v1645, %v1641
      %v1647 = vrcp.pop %v1509
      %v1648 = vmul.f32 %v1509, %v1647
      %v1649 = vsub.f32 1.0, %v1648
      %v1650 = vmul.f32 %v1647, %v1649
      %v1651 = vadd.f32 %v1647, %v1650
      %vm1652 = vweird.f32 %v1509
      %vm1653 = vweird.f32 %v1647
      %vm1654 = vmor %vm1652, %vm1653
      %v1655 = vsel %vm1654, %v1647, %v1651
      %v1656 = vand.u32 2147483647, %v1509
      %vm1657 = vcmp.eq.f32.partialorder %v1656, 8.507059e+37
      %v1658 = vand.u32 %v1509, 2147483648
      %v1659 = vor.u32 1.1754944e-38, %v1658
      %v1660 = vsel %vm1657, %v1659, %v1655
      %v1661 = vrcp.pop %v1512
      %v1662 = vmul.f32 %v1512, %v1661
      %v1663 = vsub.f32 1.0, %v1662
      %v1664 = vmul.f32 %v1661, %v1663
      %v1665 = vadd.f32 %v1661, %v1664
      %vm1666 = vweird.f32 %v1512
      %vm1667 = vweird.f32 %v1661
      %vm1668 = vmor %vm1666, %vm1667
      %v1669 = vsel %vm1668, %v1661, %v1665
      %v1670 = vand.u32 2147483647, %v1512
      %vm1671 = vcmp.eq.f32.partialorder %v1670, 8.507059e+37
      %v1672 = vand.u32 %v1512, 2147483648
      %v1673 = vor.u32 1.1754944e-38, %v1672
      %v1674 = vsel %vm1671, %v1673, %v1669
      %v1675 = vrcp.pop %v1515
      %v1676 = vmul.f32 %v1515, %v1675
      %v1677 = vsub.f32 1.0, %v1676
      %v1678 = vmul.f32 %v1675, %v1677
      %v1679 = vadd.f32 %v1675, %v1678
      %vm1680 = vweird.f32 %v1515
      %vm1681 = vweird.f32 %v1675
      %vm1682 = vmor %vm1680, %vm1681
      %v1683 = vsel %vm1682, %v1675, %v1679
      %v1684 = vand.u32 2147483647, %v1515
      %vm1685 = vcmp.eq.f32.partialorder %v1684, 8.507059e+37
      %v1686 = vand.u32 %v1515, 2147483648
      %v1687 = vor.u32 1.1754944e-38, %v1686
      %v1688 = vsel %vm1685, %v1687, %v1683
      %v1689 = vrcp.pop %v1518
      %v1690 = vmul.f32 %v1518, %v1689
      %v1691 = vsub.f32 1.0, %v1690
      %v1692 = vmul.f32 %v1689, %v1691
      %v1693 = vadd.f32 %v1689, %v1692
      %vm1694 = vweird.f32 %v1518
      %vm1695 = vweird.f32 %v1689
      %vm1696 = vmor %vm1694, %vm1695
      %v1697 = vsel %vm1696, %v1689, %v1693
      %v1698 = vand.u32 2147483647, %v1518
      %vm1699 = vcmp.eq.f32.partialorder %v1698, 8.507059e+37
      %v1700 = vand.u32 %v1518, 2147483648
      %v1701 = vor.u32 1.1754944e-38, %v1700
      %v1702 = vsel %vm1699, %v1701, %v1697
      %v1703 = vrcp.pop %v1521
      %v1704 = vmul.f32 %v1521, %v1703
      %v1705 = vsub.f32 1.0, %v1704
      %v1706 = vmul.f32 %v1703, %v1705
      %v1707 = vadd.f32 %v1703, %v1706
      %vm1708 = vweird.f32 %v1521
      %vm1709 = vweird.f32 %v1703
      %vm1710 = vmor %vm1708, %vm1709
      %v1711 = vsel %vm1710, %v1703, %v1707
      %v1712 = vand.u32 2147483647, %v1521
      %vm1713 = vcmp.eq.f32.partialorder %v1712, 8.507059e+37
      %v1714 = vand.u32 %v1521, 2147483648
      %v1715 = vor.u32 1.1754944e-38, %v1714
      %v1716 = vsel %vm1713, %v1715, %v1711
      %v1717 = vrcp.pop %v1524
      %v1718 = vmul.f32 %v1524, %v1717
      %v1719 = vsub.f32 1.0, %v1718
      %v1720 = vmul.f32 %v1717, %v1719
      %v1721 = vadd.f32 %v1717, %v1720
      %vm1722 = vweird.f32 %v1524
      %vm1723 = vweird.f32 %v1717
      %vm1724 = vmor %vm1722, %vm1723
      %v1725 = vsel %vm1724, %v1717, %v1721
      %v1726 = vand.u32 2147483647, %v1524
      %vm1727 = vcmp.eq.f32.partialorder %v1726, 8.507059e+37
      %v1728 = vand.u32 %v1524, 2147483648
      %v1729 = vor.u32 1.1754944e-38, %v1728
      %v1730 = vsel %vm1727, %v1729, %v1725
      %v1731 = vrcp.pop %v1527
      %v1732 = vmul.f32 %v1527, %v1731
      %v1733 = vsub.f32 1.0, %v1732
      %v1734 = vmul.f32 %v1731, %v1733
      %v1735 = vadd.f32 %v1731, %v1734
      %vm1736 = vweird.f32 %v1527
      %vm1737 = vweird.f32 %v1731
      %vm1738 = vmor %vm1736, %vm1737
      %v1739 = vsel %vm1738, %v1731, %v1735
      %v1740 = vand.u32 2147483647, %v1527
      %vm1741 = vcmp.eq.f32.partialorder %v1740, 8.507059e+37
      %v1742 = vand.u32 %v1527, 2147483648
      %v1743 = vor.u32 1.1754944e-38, %v1742
      %v1744 = vsel %vm1741, %v1743, %v1739
      %v1745 = vrcp.pop %v1530
      %v1746 = vmul.f32 %v1530, %v1745
      %v1747 = vsub.f32 1.0, %v1746
      %v1748 = vmul.f32 %v1745, %v1747
      %v1749 = vadd.f32 %v1745, %v1748
      %vm1750 = vweird.f32 %v1530
      %vm1751 = vweird.f32 %v1745
      %vm1752 = vmor %vm1750, %vm1751
      %v1753 = vsel %vm1752, %v1745, %v1749
      %v1754 = vand.u32 2147483647, %v1530
      %vm1755 = vcmp.eq.f32.partialorder %v1754, 8.507059e+37
      %v1756 = vand.u32 %v1530, 2147483648
      %v1757 = vor.u32 1.1754944e-38, %v1756
      %v1758 = vsel %vm1755, %v1757, %v1753
      %v1759 = vrcp.pop %v1533
      %v1760 = vmul.f32 %v1533, %v1759
      %v1761 = vsub.f32 1.0, %v1760
      %v1762 = vmul.f32 %v1759, %v1761
      %v1763 = vadd.f32 %v1759, %v1762
      %vm1764 = vweird.f32 %v1533
      %vm1765 = vweird.f32 %v1759
      %vm1766 = vmor %vm1764, %vm1765
      %v1767 = vsel %vm1766, %v1759, %v1763
      %v1768 = vand.u32 2147483647, %v1533
      %vm1769 = vcmp.eq.f32.partialorder %v1768, 8.507059e+37
      %v1770 = vand.u32 %v1533, 2147483648
      %v1771 = vor.u32 1.1754944e-38, %v1770
      %v1772 = vsel %vm1769, %v1771, %v1767
      %v1773 = vrcp.pop %v1536
      %v1774 = vmul.f32 %v1536, %v1773
      %v1775 = vsub.f32 1.0, %v1774
      %v1776 = vmul.f32 %v1773, %v1775
      %v1777 = vadd.f32 %v1773, %v1776
      %vm1778 = vweird.f32 %v1536
      %vm1779 = vweird.f32 %v1773
      %vm1780 = vmor %vm1778, %vm1779
      %v1781 = vsel %vm1780, %v1773, %v1777
      %v1782 = vand.u32 2147483647, %v1536
      %vm1783 = vcmp.eq.f32.partialorder %v1782, 8.507059e+37
      %v1784 = vand.u32 %v1536, 2147483648
      %v1785 = vor.u32 1.1754944e-38, %v1784
      %v1786 = vsel %vm1783, %v1785, %v1781
      %v1787 = vrcp.pop %v1539
      %v1788 = vmul.f32 %v1539, %v1787
      %v1789 = vsub.f32 1.0, %v1788
      %v1790 = vmul.f32 %v1787, %v1789
      %v1791 = vadd.f32 %v1787, %v1790
      %vm1792 = vweird.f32 %v1539
      %vm1793 = vweird.f32 %v1787
      %vm1794 = vmor %vm1792, %vm1793
      %v1795 = vsel %vm1794, %v1787, %v1791
      %v1796 = vand.u32 2147483647, %v1539
      %vm1797 = vcmp.eq.f32.partialorder %v1796, 8.507059e+37
      %v1798 = vand.u32 %v1539, 2147483648
      %v1799 = vor.u32 1.1754944e-38, %v1798
      %v1800 = vsel %vm1797, %v1799, %v1795
      %v1801 = vrcp.pop %v1542
      %v1802 = vmul.f32 %v1542, %v1801
      %v1803 = vsub.f32 1.0, %v1802
      %v1804 = vmul.f32 %v1801, %v1803
      %v1805 = vadd.f32 %v1801, %v1804
      %vm1806 = vweird.f32 %v1542
      %vm1807 = vweird.f32 %v1801
      %vm1808 = vmor %vm1806, %vm1807
      %v1809 = vsel %vm1808, %v1801, %v1805
      %v1810 = vand.u32 2147483647, %v1542
      %vm1811 = vcmp.eq.f32.partialorder %v1810, 8.507059e+37
      %v1812 = vand.u32 %v1542, 2147483648
      %v1813 = vor.u32 1.1754944e-38, %v1812
      %v1814 = vsel %vm1811, %v1813, %v1809
      %v1815 = vrcp.pop %v1545
      %v1816 = vmul.f32 %v1545, %v1815
      %v1817 = vsub.f32 1.0, %v1816
      %v1818 = vmul.f32 %v1815, %v1817
      %v1819 = vadd.f32 %v1815, %v1818
      %vm1820 = vweird.f32 %v1545
      %vm1821 = vweird.f32 %v1815
      %vm1822 = vmor %vm1820, %vm1821
      %v1823 = vsel %vm1822, %v1815, %v1819
      %v1824 = vand.u32 2147483647, %v1545
      %vm1825 = vcmp.eq.f32.partialorder %v1824, 8.507059e+37
      %v1826 = vand.u32 %v1545, 2147483648
      %v1827 = vor.u32 1.1754944e-38, %v1826
      %v1828 = vsel %vm1825, %v1827, %v1823
      %v1829 = vrcp.pop %v1548
      %v1830 = vmul.f32 %v1548, %v1829
      %v1831 = vsub.f32 1.0, %v1830
      %v1832 = vmul.f32 %v1829, %v1831
      %v1833 = vadd.f32 %v1829, %v1832
      %vm1834 = vweird.f32 %v1548
      %vm1835 = vweird.f32 %v1829
      %vm1836 = vmor %vm1834, %vm1835
      %v1837 = vsel %vm1836, %v1829, %v1833
      %v1838 = vand.u32 2147483647, %v1548
      %vm1839 = vcmp.eq.f32.partialorder %v1838, 8.507059e+37
      %v1840 = vand.u32 %v1548, 2147483648
      %v1841 = vor.u32 1.1754944e-38, %v1840
      %v1842 = vsel %vm1839, %v1841, %v1837
      %v1843 = vrcp.pop %v1551
      %v1844 = vmul.f32 %v1551, %v1843
      %v1845 = vsub.f32 1.0, %v1844
      %v1846 = vmul.f32 %v1843, %v1845
      %v1847 = vadd.f32 %v1843, %v1846
      %vm1848 = vweird.f32 %v1551
      %vm1849 = vweird.f32 %v1843
      %vm1850 = vmor %vm1848, %vm1849
      %v1851 = vsel %vm1850, %v1843, %v1847
      %v1852 = vand.u32 2147483647, %v1551
      %vm1853 = vcmp.eq.f32.partialorder %v1852, 8.507059e+37
      %v1854 = vand.u32 %v1551, 2147483648
      %v1855 = vor.u32 1.1754944e-38, %v1854
      %v1856 = vsel %vm1853, %v1855, %v1851
      %v1857 = vrcp.pop %v1554
      %v1858 = vmul.f32 %v1554, %v1857
      %v1859 = vsub.f32 1.0, %v1858
      %v1860 = vmul.f32 %v1857, %v1859
      %v1861 = vadd.f32 %v1857, %v1860
      %vm1862 = vweird.f32 %v1554
      %vm1863 = vweird.f32 %v1857
      %vm1864 = vmor %vm1862, %vm1863
      %v1865 = vsel %vm1864, %v1857, %v1861
      %v1866 = vand.u32 2147483647, %v1554
      %vm1867 = vcmp.eq.f32.partialorder %v1866, 8.507059e+37
      %v1868 = vand.u32 %v1554, 2147483648
      %v1869 = vor.u32 1.1754944e-38, %v1868
      %v1870 = vsel %vm1867, %v1869, %v1865
      %v1871 = vrcp.pop %v1557
      %v1872 = vmul.f32 %v1557, %v1871
      %v1873 = vsub.f32 1.0, %v1872
      %v1874 = vmul.f32 %v1871, %v1873
      %v1875 = vadd.f32 %v1871, %v1874
      %vm1876 = vweird.f32 %v1557
      %vm1877 = vweird.f32 %v1871
      %vm1878 = vmor %vm1876, %vm1877
      %v1879 = vsel %vm1878, %v1871, %v1875
      %v1880 = vand.u32 2147483647, %v1557
      %vm1881 = vcmp.eq.f32.partialorder %v1880, 8.507059e+37
      %v1882 = vand.u32 %v1557, 2147483648
      %v1883 = vor.u32 1.1754944e-38, %v1882
      %v1884 = vsel %vm1881, %v1883, %v1879
      %v1885 = vrcp.pop %v1560
      %v1886 = vmul.f32 %v1560, %v1885
      %v1887 = vsub.f32 1.0, %v1886
      %v1888 = vmul.f32 %v1885, %v1887
      %v1889 = vadd.f32 %v1885, %v1888
      %vm1890 = vweird.f32 %v1560
      %vm1891 = vweird.f32 %v1885
      %vm1892 = vmor %vm1890, %vm1891
      %v1893 = vsel %vm1892, %v1885, %v1889
      %v1894 = vand.u32 2147483647, %v1560
      %vm1895 = vcmp.eq.f32.partialorder %v1894, 8.507059e+37
      %v1896 = vand.u32 %v1560, 2147483648
      %v1897 = vor.u32 1.1754944e-38, %v1896
      %v1898 = vsel %vm1895, %v1897, %v1893
      %v1899 = vrcp.pop %v1563
      %v1900 = vmul.f32 %v1563, %v1899
      %v1901 = vsub.f32 1.0, %v1900
      %v1902 = vmul.f32 %v1899, %v1901
      %v1903 = vadd.f32 %v1899, %v1902
      %vm1904 = vweird.f32 %v1563
      %vm1905 = vweird.f32 %v1899
      %vm1906 = vmor %vm1904, %vm1905
      %v1907 = vsel %vm1906, %v1899, %v1903
      %v1908 = vand.u32 2147483647, %v1563
      %vm1909 = vcmp.eq.f32.partialorder %v1908, 8.507059e+37
      %v1910 = vand.u32 %v1563, 2147483648
      %v1911 = vor.u32 1.1754944e-38, %v1910
      %v1912 = vsel %vm1909, %v1911, %v1907
      %v1913 = vrcp.pop %v1566
      %v1914 = vmul.f32 %v1566, %v1913
      %v1915 = vsub.f32 1.0, %v1914
      %v1916 = vmul.f32 %v1913, %v1915
      %v1917 = vadd.f32 %v1913, %v1916
      %vm1918 = vweird.f32 %v1566
      %vm1919 = vweird.f32 %v1913
      %vm1920 = vmor %vm1918, %vm1919
      %v1921 = vsel %vm1920, %v1913, %v1917
      %v1922 = vand.u32 2147483647, %v1566
      %vm1923 = vcmp.eq.f32.partialorder %v1922, 8.507059e+37
      %v1924 = vand.u32 %v1566, 2147483648
      %v1925 = vor.u32 1.1754944e-38, %v1924
      %v1926 = vsel %vm1923, %v1925, %v1921
      %v1927 = vrcp.pop %v1569
      %v1928 = vmul.f32 %v1569, %v1927
      %v1929 = vsub.f32 1.0, %v1928
      %v1930 = vmul.f32 %v1927, %v1929
      %v1931 = vadd.f32 %v1927, %v1930
      %vm1932 = vweird.f32 %v1569
      %vm1933 = vweird.f32 %v1927
      %vm1934 = vmor %vm1932, %vm1933
      %v1935 = vsel %vm1934, %v1927, %v1931
      %v1936 = vand.u32 2147483647, %v1569
      %vm1937 = vcmp.eq.f32.partialorder %v1936, 8.507059e+37
      %v1938 = vand.u32 %v1569, 2147483648
      %v1939 = vor.u32 1.1754944e-38, %v1938
      %v1940 = vsel %vm1937, %v1939, %v1935
      %v1941 = vrcp.pop %v1572
      %v1942 = vmul.f32 %v1572, %v1941
      %v1943 = vsub.f32 1.0, %v1942
      %v1944 = vmul.f32 %v1941, %v1943
      %v1945 = vadd.f32 %v1941, %v1944
      %vm1946 = vweird.f32 %v1572
      %vm1947 = vweird.f32 %v1941
      %vm1948 = vmor %vm1946, %vm1947
      %v1949 = vsel %vm1948, %v1941, %v1945
      %v1950 = vand.u32 2147483647, %v1572
      %vm1951 = vcmp.eq.f32.partialorder %v1950, 8.507059e+37
      %v1952 = vand.u32 %v1572, 2147483648
      %v1953 = vor.u32 1.1754944e-38, %v1952
      %v1954 = vsel %vm1951, %v1953, %v1949
      %v1955 = vrcp.pop %v1575
      %v1956 = vmul.f32 %v1575, %v1955
      %v1957 = vsub.f32 1.0, %v1956
      %v1958 = vmul.f32 %v1955, %v1957
      %v1959 = vadd.f32 %v1955, %v1958
      %vm1960 = vweird.f32 %v1575
      %vm1961 = vweird.f32 %v1955
      %vm1962 = vmor %vm1960, %vm1961
      %v1963 = vsel %vm1962, %v1955, %v1959
      %v1964 = vand.u32 2147483647, %v1575
      %vm1965 = vcmp.eq.f32.partialorder %v1964, 8.507059e+37
      %v1966 = vand.u32 %v1575, 2147483648
      %v1967 = vor.u32 1.1754944e-38, %v1966
      %v1968 = vsel %vm1965, %v1967, %v1963
      %v1969 = vrcp.pop %v1578
      %v1970 = vmul.f32 %v1578, %v1969
      %v1971 = vsub.f32 1.0, %v1970
      %v1972 = vmul.f32 %v1969, %v1971
      %v1973 = vadd.f32 %v1969, %v1972
      %vm1974 = vweird.f32 %v1578
      %vm1975 = vweird.f32 %v1969
      %vm1976 = vmor %vm1974, %vm1975
      %v1977 = vsel %vm1976, %v1969, %v1973
      %v1978 = vand.u32 2147483647, %v1578
      %vm1979 = vcmp.eq.f32.partialorder %v1978, 8.507059e+37
      %v1980 = vand.u32 %v1578, 2147483648
      %v1981 = vor.u32 1.1754944e-38, %v1980
      %v1982 = vsel %vm1979, %v1981, %v1977
      %v1983 = vrcp.pop %v1581
      %v1984 = vmul.f32 %v1581, %v1983
      %v1985 = vsub.f32 1.0, %v1984
      %v1986 = vmul.f32 %v1983, %v1985
      %v1987 = vadd.f32 %v1983, %v1986
      %vm1988 = vweird.f32 %v1581
      %vm1989 = vweird.f32 %v1983
      %vm1990 = vmor %vm1988, %vm1989
      %v1991 = vsel %vm1990, %v1983, %v1987
      %v1992 = vand.u32 2147483647, %v1581
      %vm1993 = vcmp.eq.f32.partialorder %v1992, 8.507059e+37
      %v1994 = vand.u32 %v1581, 2147483648
      %v1995 = vor.u32 1.1754944e-38, %v1994
      %v1996 = vsel %vm1993, %v1995, %v1991
      %v1997 = vrcp.pop %v1584
      %v1998 = vmul.f32 %v1584, %v1997
      %v1999 = vsub.f32 1.0, %v1998
      %v2000 = vmul.f32 %v1997, %v1999
      %v2001 = vadd.f32 %v1997, %v2000
      %vm2002 = vweird.f32 %v1584
      %vm2003 = vweird.f32 %v1997
      %vm2004 = vmor %vm2002, %vm2003
      %v2005 = vsel %vm2004, %v1997, %v2001
      %v2006 = vand.u32 2147483647, %v1584
      %vm2007 = vcmp.eq.f32.partialorder %v2006, 8.507059e+37
      %v2008 = vand.u32 %v1584, 2147483648
      %v2009 = vor.u32 1.1754944e-38, %v2008
      %v2010 = vsel %vm2007, %v2009, %v2005
      %v2011 = vrcp.pop %v1587
      %v2012 = vmul.f32 %v1587, %v2011
      %v2013 = vsub.f32 1.0, %v2012
      %v2014 = vmul.f32 %v2011, %v2013
      %v2015 = vadd.f32 %v2011, %v2014
      %vm2016 = vweird.f32 %v1587
      %vm2017 = vweird.f32 %v2011
      %vm2018 = vmor %vm2016, %vm2017
      %v2019 = vsel %vm2018, %v2011, %v2015
      %v2020 = vand.u32 2147483647, %v1587
      %vm2021 = vcmp.eq.f32.partialorder %v2020, 8.507059e+37
      %v2022 = vand.u32 %v1587, 2147483648
      %v2023 = vor.u32 1.1754944e-38, %v2022
      %v2024 = vsel %vm2021, %v2023, %v2019
      %v2025 = vrcp.pop %v1590
      %v2026 = vmul.f32 %v1590, %v2025
      %v2027 = vsub.f32 1.0, %v2026
      %v2028 = vmul.f32 %v2025, %v2027
      %v2029 = vadd.f32 %v2025, %v2028
      %vm2030 = vweird.f32 %v1590
      %vm2031 = vweird.f32 %v2025
      %vm2032 = vmor %vm2030, %vm2031
      %v2033 = vsel %vm2032, %v2025, %v2029
      %v2034 = vand.u32 2147483647, %v1590
      %vm2035 = vcmp.eq.f32.partialorder %v2034, 8.507059e+37
      %v2036 = vand.u32 %v1590, 2147483648
      %v2037 = vor.u32 1.1754944e-38, %v2036
      %v2038 = vsel %vm2035, %v2037, %v2033
      %v2039 = vmul.f32 %v1432, %v1604
      %v2040 = vmul.f32 %v1434, %v1618
      %v2041 = vmul.f32 %v1436, %v1632
      %v2042 = vmul.f32 %v1438, %v1646
      %v2043 = vmul.f32 %v1440, %v1660
      %v2044 = vmul.f32 %v1442, %v1674
      %v2045 = vmul.f32 %v1444, %v1688
      %v2046 = vmul.f32 %v1446, %v1702
      %v2047 = vmul.f32 %v1448, %v1716
      %v2048 = vmul.f32 %v1450, %v1730
      %v2049 = vmul.f32 %v1452, %v1744
      %v2050 = vmul.f32 %v1454, %v1758
      %v2051 = vmul.f32 %v1456, %v1772
      %v2052 = vmul.f32 %v1458, %v1786
      %v2053 = vmul.f32 %v1460, %v1800
      %v2054 = vmul.f32 %v1462, %v1814
      %v2055 = vmul.f32 %v1464, %v1828
      %v2056 = vmul.f32 %v1466, %v1842
      %v2057 = vmul.f32 %v1468, %v1856
      %v2058 = vmul.f32 %v1470, %v1870
      %v2059 = vmul.f32 %v1472, %v1884
      %v2060 = vmul.f32 %v1474, %v1898
      %v2061 = vmul.f32 %v1476, %v1912
      %v2062 = vmul.f32 %v1478, %v1926
      %v2063 = vmul.f32 %v1480, %v1940
      %v2064 = vmul.f32 %v1482, %v1954
      %v2065 = vmul.f32 %v1484, %v1968
      %v2066 = vmul.f32 %v1486, %v1982
      %v2067 = vmul.f32 %v1488, %v1996
      %v2068 = vmul.f32 %v1490, %v2010
      %v2069 = vmul.f32 %v1492, %v2024
      %v2070 = vmul.f32 %v1494, %v2038
      %v2072 = vsel %vm1302, %v2039, 0
      %2074 = vmatpush.msra.mxu0 0.0
      %2075 = vmatpush.msra.mxu0 0.0
      %2076 = vmatpush.msra.mxu0 0.0
      %2077 = vmatpush.msra.mxu0 0.0
      %2078 = vmatpush.msra.mxu0 0.0
      %2079 = vmatpush.msra.mxu0 0.0
      %2080 = vmatpush.msra.mxu0 0.0
      %2081 = vmatpush.msra.mxu0 0.0
      %2082 = vmatpush.msra.mxu0 0.0
      %2083 = vmatpush.msra.mxu0 0.0
      %2084 = vmatpush.msra.mxu0 0.0
      %2085 = vmatpush.msra.mxu0 0.0
      %2086 = vmatpush.msra.mxu0 0.0
      %2087 = vmatpush.msra.mxu0 0.0
      %2088 = vmatpush.msra.mxu0 0.0
      %2089 = vmatpush.msra.mxu0 %v567
      %2090 = vmatmul.f32.gmra.mxu0 %v2072
      %v2091 = vpop.f32.mrf.mxu0
      %v2092 = vadd.f32 0.0, %v2091
      %2093 = vdwg.mxu0
      %v2095 = vsel %vm1302, %v2040, 0
      %2097 = vmatpush.msra.mxu0 0.0
      %2098 = vmatpush.msra.mxu0 0.0
      %2099 = vmatpush.msra.mxu0 0.0
      %2100 = vmatpush.msra.mxu0 0.0
      %2101 = vmatpush.msra.mxu0 0.0
      %2102 = vmatpush.msra.mxu0 0.0
      %2103 = vmatpush.msra.mxu0 0.0
      %2104 = vmatpush.msra.mxu0 0.0
      %2105 = vmatpush.msra.mxu0 0.0
      %2106 = vmatpush.msra.mxu0 0.0
      %2107 = vmatpush.msra.mxu0 0.0
      %2108 = vmatpush.msra.mxu0 0.0
      %2109 = vmatpush.msra.mxu0 0.0
      %2110 = vmatpush.msra.mxu0 0.0
      %2111 = vmatpush.msra.mxu0 0.0
      %2112 = vmatpush.msra.mxu0 %v570
      %2113 = vmatmul.f32.gmra.mxu0 %v2095
      %v2114 = vpop.f32.mrf.mxu0
      %v2115 = vadd.f32 0.0, %v2114
      %2116 = vdwg.mxu0
      %v2118 = vsel %vm1302, %v2041, 0
      %2120 = vmatpush.msra.mxu0 0.0
      %2121 = vmatpush.msra.mxu0 0.0
      %2122 = vmatpush.msra.mxu0 0.0
      %2123 = vmatpush.msra.mxu0 0.0
      %2124 = vmatpush.msra.mxu0 0.0
      %2125 = vmatpush.msra.mxu0 0.0
      %2126 = vmatpush.msra.mxu0 0.0
      %2127 = vmatpush.msra.mxu0 0.0
      %2128 = vmatpush.msra.mxu0 0.0
      %2129 = vmatpush.msra.mxu0 0.0
      %2130 = vmatpush.msra.mxu0 0.0
      %2131 = vmatpush.msra.mxu0 0.0
      %2132 = vmatpush.msra.mxu0 0.0
      %2133 = vmatpush.msra.mxu0 0.0
      %2134 = vmatpush.msra.mxu0 0.0
      %2135 = vmatpush.msra.mxu0 %v573
      %2136 = vmatmul.f32.gmra.mxu0 %v2118
      %v2137 = vpop.f32.mrf.mxu0
      %v2138 = vadd.f32 0.0, %v2137
      %2139 = vdwg.mxu0
      %v2141 = vsel %vm1302, %v2042, 0
      %2143 = vmatpush.msra.mxu0 0.0
      %2144 = vmatpush.msra.mxu0 0.0
      %2145 = vmatpush.msra.mxu0 0.0
      %2146 = vmatpush.msra.mxu0 0.0
      %2147 = vmatpush.msra.mxu0 0.0
      %2148 = vmatpush.msra.mxu0 0.0
      %2149 = vmatpush.msra.mxu0 0.0
      %2150 = vmatpush.msra.mxu0 0.0
      %2151 = vmatpush.msra.mxu0 0.0
      %2152 = vmatpush.msra.mxu0 0.0
      %2153 = vmatpush.msra.mxu0 0.0
      %2154 = vmatpush.msra.mxu0 0.0
      %2155 = vmatpush.msra.mxu0 0.0
      %2156 = vmatpush.msra.mxu0 0.0
      %2157 = vmatpush.msra.mxu0 0.0
      %2158 = vmatpush.msra.mxu0 %v576
      %2159 = vmatmul.f32.gmra.mxu0 %v2141
      %v2160 = vpop.f32.mrf.mxu0
      %v2161 = vadd.f32 0.0, %v2160
      %2162 = vdwg.mxu0
      %v2164 = vsel %vm1302, %v2043, 0
      %2166 = vmatpush.msra.mxu0 0.0
      %2167 = vmatpush.msra.mxu0 0.0
      %2168 = vmatpush.msra.mxu0 0.0
      %2169 = vmatpush.msra.mxu0 0.0
      %2170 = vmatpush.msra.mxu0 0.0
      %2171 = vmatpush.msra.mxu0 0.0
      %2172 = vmatpush.msra.mxu0 0.0
      %2173 = vmatpush.msra.mxu0 0.0
      %2174 = vmatpush.msra.mxu0 0.0
      %2175 = vmatpush.msra.mxu0 0.0
      %2176 = vmatpush.msra.mxu0 0.0
      %2177 = vmatpush.msra.mxu0 0.0
      %2178 = vmatpush.msra.mxu0 0.0
      %2179 = vmatpush.msra.mxu0 0.0
      %2180 = vmatpush.msra.mxu0 0.0
      %2181 = vmatpush.msra.mxu0 %v579
      %2182 = vmatmul.f32.gmra.mxu0 %v2164
      %v2183 = vpop.f32.mrf.mxu0
      %v2184 = vadd.f32 0.0, %v2183
      %2185 = vdwg.mxu0
      %v2187 = vsel %vm1302, %v2044, 0
      %2189 = vmatpush.msra.mxu0 0.0
      %2190 = vmatpush.msra.mxu0 0.0
      %2191 = vmatpush.msra.mxu0 0.0
      %2192 = vmatpush.msra.mxu0 0.0
      %2193 = vmatpush.msra.mxu0 0.0
      %2194 = vmatpush.msra.mxu0 0.0
      %2195 = vmatpush.msra.mxu0 0.0
      %2196 = vmatpush.msra.mxu0 0.0
      %2197 = vmatpush.msra.mxu0 0.0
      %2198 = vmatpush.msra.mxu0 0.0
      %2199 = vmatpush.msra.mxu0 0.0
      %2200 = vmatpush.msra.mxu0 0.0
      %2201 = vmatpush.msra.mxu0 0.0
      %2202 = vmatpush.msra.mxu0 0.0
      %2203 = vmatpush.msra.mxu0 0.0
      %2204 = vmatpush.msra.mxu0 %v582
      %2205 = vmatmul.f32.gmra.mxu0 %v2187
      %v2206 = vpop.f32.mrf.mxu0
      %v2207 = vadd.f32 0.0, %v2206
      %2208 = vdwg.mxu0
      %v2210 = vsel %vm1302, %v2045, 0
      %2212 = vmatpush.msra.mxu0 0.0
      %2213 = vmatpush.msra.mxu0 0.0
      %2214 = vmatpush.msra.mxu0 0.0
      %2215 = vmatpush.msra.mxu0 0.0
      %2216 = vmatpush.msra.mxu0 0.0
      %2217 = vmatpush.msra.mxu0 0.0
      %2218 = vmatpush.msra.mxu0 0.0
      %2219 = vmatpush.msra.mxu0 0.0
      %2220 = vmatpush.msra.mxu0 0.0
      %2221 = vmatpush.msra.mxu0 0.0
      %2222 = vmatpush.msra.mxu0 0.0
      %2223 = vmatpush.msra.mxu0 0.0
      %2224 = vmatpush.msra.mxu0 0.0
      %2225 = vmatpush.msra.mxu0 0.0
      %2226 = vmatpush.msra.mxu0 0.0
      %2227 = vmatpush.msra.mxu0 %v585
      %2228 = vmatmul.f32.gmra.mxu0 %v2210
      %v2229 = vpop.f32.mrf.mxu0
      %v2230 = vadd.f32 0.0, %v2229
      %2231 = vdwg.mxu0
      %v2233 = vsel %vm1302, %v2046, 0
      %2235 = vmatpush.msra.mxu0 0.0
      %2236 = vmatpush.msra.mxu0 0.0
      %2237 = vmatpush.msra.mxu0 0.0
      %2238 = vmatpush.msra.mxu0 0.0
      %2239 = vmatpush.msra.mxu0 0.0
      %2240 = vmatpush.msra.mxu0 0.0
      %2241 = vmatpush.msra.mxu0 0.0
      %2242 = vmatpush.msra.mxu0 0.0
      %2243 = vmatpush.msra.mxu0 0.0
      %2244 = vmatpush.msra.mxu0 0.0
      %2245 = vmatpush.msra.mxu0 0.0
      %2246 = vmatpush.msra.mxu0 0.0
      %2247 = vmatpush.msra.mxu0 0.0
      %2248 = vmatpush.msra.mxu0 0.0
      %2249 = vmatpush.msra.mxu0 0.0
      %2250 = vmatpush.msra.mxu0 %v588
      %2251 = vmatmul.f32.gmra.mxu0 %v2233
      %v2252 = vpop.f32.mrf.mxu0
      %v2253 = vadd.f32 0.0, %v2252
      %2254 = vdwg.mxu0
      %v2256 = vsel %vm1302, %v2047, 0
      %2258 = vmatpush.msra.mxu0 0.0
      %2259 = vmatpush.msra.mxu0 0.0
      %2260 = vmatpush.msra.mxu0 0.0
      %2261 = vmatpush.msra.mxu0 0.0
      %2262 = vmatpush.msra.mxu0 0.0
      %2263 = vmatpush.msra.mxu0 0.0
      %2264 = vmatpush.msra.mxu0 0.0
      %2265 = vmatpush.msra.mxu0 0.0
      %2266 = vmatpush.msra.mxu0 0.0
      %2267 = vmatpush.msra.mxu0 0.0
      %2268 = vmatpush.msra.mxu0 0.0
      %2269 = vmatpush.msra.mxu0 0.0
      %2270 = vmatpush.msra.mxu0 0.0
      %2271 = vmatpush.msra.mxu0 0.0
      %2272 = vmatpush.msra.mxu0 0.0
      %2273 = vmatpush.msra.mxu0 %v591
      %2274 = vmatmul.f32.gmra.mxu0 %v2256
      %v2275 = vpop.f32.mrf.mxu0
      %v2276 = vadd.f32 0.0, %v2275
      %2277 = vdwg.mxu0
      %v2279 = vsel %vm1302, %v2048, 0
      %2281 = vmatpush.msra.mxu0 0.0
      %2282 = vmatpush.msra.mxu0 0.0
      %2283 = vmatpush.msra.mxu0 0.0
      %2284 = vmatpush.msra.mxu0 0.0
      %2285 = vmatpush.msra.mxu0 0.0
      %2286 = vmatpush.msra.mxu0 0.0
      %2287 = vmatpush.msra.mxu0 0.0
      %2288 = vmatpush.msra.mxu0 0.0
      %2289 = vmatpush.msra.mxu0 0.0
      %2290 = vmatpush.msra.mxu0 0.0
      %2291 = vmatpush.msra.mxu0 0.0
      %2292 = vmatpush.msra.mxu0 0.0
      %2293 = vmatpush.msra.mxu0 0.0
      %2294 = vmatpush.msra.mxu0 0.0
      %2295 = vmatpush.msra.mxu0 0.0
      %2296 = vmatpush.msra.mxu0 %v594
      %2297 = vmatmul.f32.gmra.mxu0 %v2279
      %v2298 = vpop.f32.mrf.mxu0
      %v2299 = vadd.f32 0.0, %v2298
      %2300 = vdwg.mxu0
      %v2302 = vsel %vm1302, %v2049, 0
      %2304 = vmatpush.msra.mxu0 0.0
      %2305 = vmatpush.msra.mxu0 0.0
      %2306 = vmatpush.msra.mxu0 0.0
      %2307 = vmatpush.msra.mxu0 0.0
      %2308 = vmatpush.msra.mxu0 0.0
      %2309 = vmatpush.msra.mxu0 0.0
      %2310 = vmatpush.msra.mxu0 0.0
      %2311 = vmatpush.msra.mxu0 0.0
      %2312 = vmatpush.msra.mxu0 0.0
      %2313 = vmatpush.msra.mxu0 0.0
      %2314 = vmatpush.msra.mxu0 0.0
      %2315 = vmatpush.msra.mxu0 0.0
      %2316 = vmatpush.msra.mxu0 0.0
      %2317 = vmatpush.msra.mxu0 0.0
      %2318 = vmatpush.msra.mxu0 0.0
      %2319 = vmatpush.msra.mxu0 %v597
      %2320 = vmatmul.f32.gmra.mxu0 %v2302
      %v2321 = vpop.f32.mrf.mxu0
      %v2322 = vadd.f32 0.0, %v2321
      %2323 = vdwg.mxu0
      %v2325 = vsel %vm1302, %v2050, 0
      %2327 = vmatpush.msra.mxu0 0.0
      %2328 = vmatpush.msra.mxu0 0.0
      %2329 = vmatpush.msra.mxu0 0.0
      %2330 = vmatpush.msra.mxu0 0.0
      %2331 = vmatpush.msra.mxu0 0.0
      %2332 = vmatpush.msra.mxu0 0.0
      %2333 = vmatpush.msra.mxu0 0.0
      %2334 = vmatpush.msra.mxu0 0.0
      %2335 = vmatpush.msra.mxu0 0.0
      %2336 = vmatpush.msra.mxu0 0.0
      %2337 = vmatpush.msra.mxu0 0.0
      %2338 = vmatpush.msra.mxu0 0.0
      %2339 = vmatpush.msra.mxu0 0.0
      %2340 = vmatpush.msra.mxu0 0.0
      %2341 = vmatpush.msra.mxu0 0.0
      %2342 = vmatpush.msra.mxu0 %v600
      %2343 = vmatmul.f32.gmra.mxu0 %v2325
      %v2344 = vpop.f32.mrf.mxu0
      %v2345 = vadd.f32 0.0, %v2344
      %2346 = vdwg.mxu0
      %v2348 = vsel %vm1302, %v2051, 0
      %2350 = vmatpush.msra.mxu0 0.0
      %2351 = vmatpush.msra.mxu0 0.0
      %2352 = vmatpush.msra.mxu0 0.0
      %2353 = vmatpush.msra.mxu0 0.0
      %2354 = vmatpush.msra.mxu0 0.0
      %2355 = vmatpush.msra.mxu0 0.0
      %2356 = vmatpush.msra.mxu0 0.0
      %2357 = vmatpush.msra.mxu0 0.0
      %2358 = vmatpush.msra.mxu0 0.0
      %2359 = vmatpush.msra.mxu0 0.0
      %2360 = vmatpush.msra.mxu0 0.0
      %2361 = vmatpush.msra.mxu0 0.0
      %2362 = vmatpush.msra.mxu0 0.0
      %2363 = vmatpush.msra.mxu0 0.0
      %2364 = vmatpush.msra.mxu0 0.0
      %2365 = vmatpush.msra.mxu0 %v603
      %2366 = vmatmul.f32.gmra.mxu0 %v2348
      %v2367 = vpop.f32.mrf.mxu0
      %v2368 = vadd.f32 0.0, %v2367
      %2369 = vdwg.mxu0
      %v2371 = vsel %vm1302, %v2052, 0
      %2373 = vmatpush.msra.mxu0 0.0
      %2374 = vmatpush.msra.mxu0 0.0
      %2375 = vmatpush.msra.mxu0 0.0
      %2376 = vmatpush.msra.mxu0 0.0
      %2377 = vmatpush.msra.mxu0 0.0
      %2378 = vmatpush.msra.mxu0 0.0
      %2379 = vmatpush.msra.mxu0 0.0
      %2380 = vmatpush.msra.mxu0 0.0
      %2381 = vmatpush.msra.mxu0 0.0
      %2382 = vmatpush.msra.mxu0 0.0
      %2383 = vmatpush.msra.mxu0 0.0
      %2384 = vmatpush.msra.mxu0 0.0
      %2385 = vmatpush.msra.mxu0 0.0
      %2386 = vmatpush.msra.mxu0 0.0
      %2387 = vmatpush.msra.mxu0 0.0
      %2388 = vmatpush.msra.mxu0 %v606
      %2389 = vmatmul.f32.gmra.mxu0 %v2371
      %v2390 = vpop.f32.mrf.mxu0
      %v2391 = vadd.f32 0.0, %v2390
      %2392 = vdwg.mxu0
      %v2394 = vsel %vm1302, %v2053, 0
      %2396 = vmatpush.msra.mxu0 0.0
      %2397 = vmatpush.msra.mxu0 0.0
      %2398 = vmatpush.msra.mxu0 0.0
      %2399 = vmatpush.msra.mxu0 0.0
      %2400 = vmatpush.msra.mxu0 0.0
      %2401 = vmatpush.msra.mxu0 0.0
      %2402 = vmatpush.msra.mxu0 0.0
      %2403 = vmatpush.msra.mxu0 0.0
      %2404 = vmatpush.msra.mxu0 0.0
      %2405 = vmatpush.msra.mxu0 0.0
      %2406 = vmatpush.msra.mxu0 0.0
      %2407 = vmatpush.msra.mxu0 0.0
      %2408 = vmatpush.msra.mxu0 0.0
      %2409 = vmatpush.msra.mxu0 0.0
      %2410 = vmatpush.msra.mxu0 0.0
      %2411 = vmatpush.msra.mxu0 %v609
      %2412 = vmatmul.f32.gmra.mxu0 %v2394
      %v2413 = vpop.f32.mrf.mxu0
      %v2414 = vadd.f32 0.0, %v2413
      %2415 = vdwg.mxu0
      %v2417 = vsel %vm1302, %v2054, 0
      %2419 = vmatpush.msra.mxu0 0.0
      %2420 = vmatpush.msra.mxu0 0.0
      %2421 = vmatpush.msra.mxu0 0.0
      %2422 = vmatpush.msra.mxu0 0.0
      %2423 = vmatpush.msra.mxu0 0.0
      %2424 = vmatpush.msra.mxu0 0.0
      %2425 = vmatpush.msra.mxu0 0.0
      %2426 = vmatpush.msra.mxu0 0.0
      %2427 = vmatpush.msra.mxu0 0.0
      %2428 = vmatpush.msra.mxu0 0.0
      %2429 = vmatpush.msra.mxu0 0.0
      %2430 = vmatpush.msra.mxu0 0.0
      %2431 = vmatpush.msra.mxu0 0.0
      %2432 = vmatpush.msra.mxu0 0.0
      %2433 = vmatpush.msra.mxu0 0.0
      %2434 = vmatpush.msra.mxu0 %v612
      %2435 = vmatmul.f32.gmra.mxu0 %v2417
      %v2436 = vpop.f32.mrf.mxu0
      %v2437 = vadd.f32 0.0, %v2436
      %2438 = vdwg.mxu0
      %v2440 = vsel %vm1302, %v2055, 0
      %2442 = vmatpush.msra.mxu0 0.0
      %2443 = vmatpush.msra.mxu0 0.0
      %2444 = vmatpush.msra.mxu0 0.0
      %2445 = vmatpush.msra.mxu0 0.0
      %2446 = vmatpush.msra.mxu0 0.0
      %2447 = vmatpush.msra.mxu0 0.0
      %2448 = vmatpush.msra.mxu0 0.0
      %2449 = vmatpush.msra.mxu0 0.0
      %2450 = vmatpush.msra.mxu0 0.0
      %2451 = vmatpush.msra.mxu0 0.0
      %2452 = vmatpush.msra.mxu0 0.0
      %2453 = vmatpush.msra.mxu0 0.0
      %2454 = vmatpush.msra.mxu0 0.0
      %2455 = vmatpush.msra.mxu0 0.0
      %2456 = vmatpush.msra.mxu0 0.0
      %2457 = vmatpush.msra.mxu0 %v615
      %2458 = vmatmul.f32.gmra.mxu0 %v2440
      %v2459 = vpop.f32.mrf.mxu0
      %v2460 = vadd.f32 0.0, %v2459
      %2461 = vdwg.mxu0
      %v2463 = vsel %vm1302, %v2056, 0
      %2465 = vmatpush.msra.mxu0 0.0
      %2466 = vmatpush.msra.mxu0 0.0
      %2467 = vmatpush.msra.mxu0 0.0
      %2468 = vmatpush.msra.mxu0 0.0
      %2469 = vmatpush.msra.mxu0 0.0
      %2470 = vmatpush.msra.mxu0 0.0
      %2471 = vmatpush.msra.mxu0 0.0
      %2472 = vmatpush.msra.mxu0 0.0
      %2473 = vmatpush.msra.mxu0 0.0
      %2474 = vmatpush.msra.mxu0 0.0
      %2475 = vmatpush.msra.mxu0 0.0
      %2476 = vmatpush.msra.mxu0 0.0
      %2477 = vmatpush.msra.mxu0 0.0
      %2478 = vmatpush.msra.mxu0 0.0
      %2479 = vmatpush.msra.mxu0 0.0
      %2480 = vmatpush.msra.mxu0 %v618
      %2481 = vmatmul.f32.gmra.mxu0 %v2463
      %v2482 = vpop.f32.mrf.mxu0
      %v2483 = vadd.f32 0.0, %v2482
      %2484 = vdwg.mxu0
      %v2486 = vsel %vm1302, %v2057, 0
      %2488 = vmatpush.msra.mxu0 0.0
      %2489 = vmatpush.msra.mxu0 0.0
      %2490 = vmatpush.msra.mxu0 0.0
      %2491 = vmatpush.msra.mxu0 0.0
      %2492 = vmatpush.msra.mxu0 0.0
      %2493 = vmatpush.msra.mxu0 0.0
      %2494 = vmatpush.msra.mxu0 0.0
      %2495 = vmatpush.msra.mxu0 0.0
      %2496 = vmatpush.msra.mxu0 0.0
      %2497 = vmatpush.msra.mxu0 0.0
      %2498 = vmatpush.msra.mxu0 0.0
      %2499 = vmatpush.msra.mxu0 0.0
      %2500 = vmatpush.msra.mxu0 0.0
      %2501 = vmatpush.msra.mxu0 0.0
      %2502 = vmatpush.msra.mxu0 0.0
      %2503 = vmatpush.msra.mxu0 %v621
      %2504 = vmatmul.f32.gmra.mxu0 %v2486
      %v2505 = vpop.f32.mrf.mxu0
      %v2506 = vadd.f32 0.0, %v2505
      %2507 = vdwg.mxu0
      %v2509 = vsel %vm1302, %v2058, 0
      %2511 = vmatpush.msra.mxu0 0.0
      %2512 = vmatpush.msra.mxu0 0.0
      %2513 = vmatpush.msra.mxu0 0.0
      %2514 = vmatpush.msra.mxu0 0.0
      %2515 = vmatpush.msra.mxu0 0.0
      %2516 = vmatpush.msra.mxu0 0.0
      %2517 = vmatpush.msra.mxu0 0.0
      %2518 = vmatpush.msra.mxu0 0.0
      %2519 = vmatpush.msra.mxu0 0.0
      %2520 = vmatpush.msra.mxu0 0.0
      %2521 = vmatpush.msra.mxu0 0.0
      %2522 = vmatpush.msra.mxu0 0.0
      %2523 = vmatpush.msra.mxu0 0.0
      %2524 = vmatpush.msra.mxu0 0.0
      %2525 = vmatpush.msra.mxu0 0.0
      %2526 = vmatpush.msra.mxu0 %v624
      %2527 = vmatmul.f32.gmra.mxu0 %v2509
      %v2528 = vpop.f32.mrf.mxu0
      %v2529 = vadd.f32 0.0, %v2528
      %2530 = vdwg.mxu0
      %v2532 = vsel %vm1302, %v2059, 0
      %2534 = vmatpush.msra.mxu0 0.0
      %2535 = vmatpush.msra.mxu0 0.0
      %2536 = vmatpush.msra.mxu0 0.0
      %2537 = vmatpush.msra.mxu0 0.0
      %2538 = vmatpush.msra.mxu0 0.0
      %2539 = vmatpush.msra.mxu0 0.0
      %2540 = vmatpush.msra.mxu0 0.0
      %2541 = vmatpush.msra.mxu0 0.0
      %2542 = vmatpush.msra.mxu0 0.0
      %2543 = vmatpush.msra.mxu0 0.0
      %2544 = vmatpush.msra.mxu0 0.0
      %2545 = vmatpush.msra.mxu0 0.0
      %2546 = vmatpush.msra.mxu0 0.0
      %2547 = vmatpush.msra.mxu0 0.0
      %2548 = vmatpush.msra.mxu0 0.0
      %2549 = vmatpush.msra.mxu0 %v627
      %2550 = vmatmul.f32.gmra.mxu0 %v2532
      %v2551 = vpop.f32.mrf.mxu0
      %v2552 = vadd.f32 0.0, %v2551
      %2553 = vdwg.mxu0
      %v2555 = vsel %vm1302, %v2060, 0
      %2557 = vmatpush.msra.mxu0 0.0
      %2558 = vmatpush.msra.mxu0 0.0
      %2559 = vmatpush.msra.mxu0 0.0
      %2560 = vmatpush.msra.mxu0 0.0
      %2561 = vmatpush.msra.mxu0 0.0
      %2562 = vmatpush.msra.mxu0 0.0
      %2563 = vmatpush.msra.mxu0 0.0
      %2564 = vmatpush.msra.mxu0 0.0
      %2565 = vmatpush.msra.mxu0 0.0
      %2566 = vmatpush.msra.mxu0 0.0
      %2567 = vmatpush.msra.mxu0 0.0
      %2568 = vmatpush.msra.mxu0 0.0
      %2569 = vmatpush.msra.mxu0 0.0
      %2570 = vmatpush.msra.mxu0 0.0
      %2571 = vmatpush.msra.mxu0 0.0
      %2572 = vmatpush.msra.mxu0 %v630
      %2573 = vmatmul.f32.gmra.mxu0 %v2555
      %v2574 = vpop.f32.mrf.mxu0
      %v2575 = vadd.f32 0.0, %v2574
      %2576 = vdwg.mxu0
      %v2578 = vsel %vm1302, %v2061, 0
      %2580 = vmatpush.msra.mxu0 0.0
      %2581 = vmatpush.msra.mxu0 0.0
      %2582 = vmatpush.msra.mxu0 0.0
      %2583 = vmatpush.msra.mxu0 0.0
      %2584 = vmatpush.msra.mxu0 0.0
      %2585 = vmatpush.msra.mxu0 0.0
      %2586 = vmatpush.msra.mxu0 0.0
      %2587 = vmatpush.msra.mxu0 0.0
      %2588 = vmatpush.msra.mxu0 0.0
      %2589 = vmatpush.msra.mxu0 0.0
      %2590 = vmatpush.msra.mxu0 0.0
      %2591 = vmatpush.msra.mxu0 0.0
      %2592 = vmatpush.msra.mxu0 0.0
      %2593 = vmatpush.msra.mxu0 0.0
      %2594 = vmatpush.msra.mxu0 0.0
      %2595 = vmatpush.msra.mxu0 %v633
      %2596 = vmatmul.f32.gmra.mxu0 %v2578
      %v2597 = vpop.f32.mrf.mxu0
      %v2598 = vadd.f32 0.0, %v2597
      %2599 = vdwg.mxu0
      %v2601 = vsel %vm1302, %v2062, 0
      %2603 = vmatpush.msra.mxu0 0.0
      %2604 = vmatpush.msra.mxu0 0.0
      %2605 = vmatpush.msra.mxu0 0.0
      %2606 = vmatpush.msra.mxu0 0.0
      %2607 = vmatpush.msra.mxu0 0.0
      %2608 = vmatpush.msra.mxu0 0.0
      %2609 = vmatpush.msra.mxu0 0.0
      %2610 = vmatpush.msra.mxu0 0.0
      %2611 = vmatpush.msra.mxu0 0.0
      %2612 = vmatpush.msra.mxu0 0.0
      %2613 = vmatpush.msra.mxu0 0.0
      %2614 = vmatpush.msra.mxu0 0.0
      %2615 = vmatpush.msra.mxu0 0.0
      %2616 = vmatpush.msra.mxu0 0.0
      %2617 = vmatpush.msra.mxu0 0.0
      %2618 = vmatpush.msra.mxu0 %v636
      %2619 = vmatmul.f32.gmra.mxu0 %v2601
      %v2620 = vpop.f32.mrf.mxu0
      %v2621 = vadd.f32 0.0, %v2620
      %2622 = vdwg.mxu0
      %v2624 = vsel %vm1302, %v2063, 0
      %2626 = vmatpush.msra.mxu0 0.0
      %2627 = vmatpush.msra.mxu0 0.0
      %2628 = vmatpush.msra.mxu0 0.0
      %2629 = vmatpush.msra.mxu0 0.0
      %2630 = vmatpush.msra.mxu0 0.0
      %2631 = vmatpush.msra.mxu0 0.0
      %2632 = vmatpush.msra.mxu0 0.0
      %2633 = vmatpush.msra.mxu0 0.0
      %2634 = vmatpush.msra.mxu0 0.0
      %2635 = vmatpush.msra.mxu0 0.0
      %2636 = vmatpush.msra.mxu0 0.0
      %2637 = vmatpush.msra.mxu0 0.0
      %2638 = vmatpush.msra.mxu0 0.0
      %2639 = vmatpush.msra.mxu0 0.0
      %2640 = vmatpush.msra.mxu0 0.0
      %2641 = vmatpush.msra.mxu0 %v639
      %2642 = vmatmul.f32.gmra.mxu0 %v2624
      %v2643 = vpop.f32.mrf.mxu0
      %v2644 = vadd.f32 0.0, %v2643
      %2645 = vdwg.mxu0
      %v2647 = vsel %vm1302, %v2064, 0
      %2649 = vmatpush.msra.mxu0 0.0
      %2650 = vmatpush.msra.mxu0 0.0
      %2651 = vmatpush.msra.mxu0 0.0
      %2652 = vmatpush.msra.mxu0 0.0
      %2653 = vmatpush.msra.mxu0 0.0
      %2654 = vmatpush.msra.mxu0 0.0
      %2655 = vmatpush.msra.mxu0 0.0
      %2656 = vmatpush.msra.mxu0 0.0
      %2657 = vmatpush.msra.mxu0 0.0
      %2658 = vmatpush.msra.mxu0 0.0
      %2659 = vmatpush.msra.mxu0 0.0
      %2660 = vmatpush.msra.mxu0 0.0
      %2661 = vmatpush.msra.mxu0 0.0
      %2662 = vmatpush.msra.mxu0 0.0
      %2663 = vmatpush.msra.mxu0 0.0
      %2664 = vmatpush.msra.mxu0 %v642
      %2665 = vmatmul.f32.gmra.mxu0 %v2647
      %v2666 = vpop.f32.mrf.mxu0
      %v2667 = vadd.f32 0.0, %v2666
      %2668 = vdwg.mxu0
      %v2670 = vsel %vm1302, %v2065, 0
      %2672 = vmatpush.msra.mxu0 0.0
      %2673 = vmatpush.msra.mxu0 0.0
      %2674 = vmatpush.msra.mxu0 0.0
      %2675 = vmatpush.msra.mxu0 0.0
      %2676 = vmatpush.msra.mxu0 0.0
      %2677 = vmatpush.msra.mxu0 0.0
      %2678 = vmatpush.msra.mxu0 0.0
      %2679 = vmatpush.msra.mxu0 0.0
      %2680 = vmatpush.msra.mxu0 0.0
      %2681 = vmatpush.msra.mxu0 0.0
      %2682 = vmatpush.msra.mxu0 0.0
      %2683 = vmatpush.msra.mxu0 0.0
      %2684 = vmatpush.msra.mxu0 0.0
      %2685 = vmatpush.msra.mxu0 0.0
      %2686 = vmatpush.msra.mxu0 0.0
      %2687 = vmatpush.msra.mxu0 %v645
      %2688 = vmatmul.f32.gmra.mxu0 %v2670
      %v2689 = vpop.f32.mrf.mxu0
      %v2690 = vadd.f32 0.0, %v2689
      %2691 = vdwg.mxu0
      %v2693 = vsel %vm1302, %v2066, 0
      %2695 = vmatpush.msra.mxu0 0.0
      %2696 = vmatpush.msra.mxu0 0.0
      %2697 = vmatpush.msra.mxu0 0.0
      %2698 = vmatpush.msra.mxu0 0.0
      %2699 = vmatpush.msra.mxu0 0.0
      %2700 = vmatpush.msra.mxu0 0.0
      %2701 = vmatpush.msra.mxu0 0.0
      %2702 = vmatpush.msra.mxu0 0.0
      %2703 = vmatpush.msra.mxu0 0.0
      %2704 = vmatpush.msra.mxu0 0.0
      %2705 = vmatpush.msra.mxu0 0.0
      %2706 = vmatpush.msra.mxu0 0.0
      %2707 = vmatpush.msra.mxu0 0.0
      %2708 = vmatpush.msra.mxu0 0.0
      %2709 = vmatpush.msra.mxu0 0.0
      %2710 = vmatpush.msra.mxu0 %v648
      %2711 = vmatmul.f32.gmra.mxu0 %v2693
      %v2712 = vpop.f32.mrf.mxu0
      %v2713 = vadd.f32 0.0, %v2712
      %2714 = vdwg.mxu0
      %v2716 = vsel %vm1302, %v2067, 0
      %2718 = vmatpush.msra.mxu0 0.0
      %2719 = vmatpush.msra.mxu0 0.0
      %2720 = vmatpush.msra.mxu0 0.0
      %2721 = vmatpush.msra.mxu0 0.0
      %2722 = vmatpush.msra.mxu0 0.0
      %2723 = vmatpush.msra.mxu0 0.0
      %2724 = vmatpush.msra.mxu0 0.0
      %2725 = vmatpush.msra.mxu0 0.0
      %2726 = vmatpush.msra.mxu0 0.0
      %2727 = vmatpush.msra.mxu0 0.0
      %2728 = vmatpush.msra.mxu0 0.0
      %2729 = vmatpush.msra.mxu0 0.0
      %2730 = vmatpush.msra.mxu0 0.0
      %2731 = vmatpush.msra.mxu0 0.0
      %2732 = vmatpush.msra.mxu0 0.0
      %2733 = vmatpush.msra.mxu0 %v651
      %2734 = vmatmul.f32.gmra.mxu0 %v2716
      %v2735 = vpop.f32.mrf.mxu0
      %v2736 = vadd.f32 0.0, %v2735
      %2737 = vdwg.mxu0
      %v2739 = vsel %vm1302, %v2068, 0
      %2741 = vmatpush.msra.mxu0 0.0
      %2742 = vmatpush.msra.mxu0 0.0
      %2743 = vmatpush.msra.mxu0 0.0
      %2744 = vmatpush.msra.mxu0 0.0
      %2745 = vmatpush.msra.mxu0 0.0
      %2746 = vmatpush.msra.mxu0 0.0
      %2747 = vmatpush.msra.mxu0 0.0
      %2748 = vmatpush.msra.mxu0 0.0
      %2749 = vmatpush.msra.mxu0 0.0
      %2750 = vmatpush.msra.mxu0 0.0
      %2751 = vmatpush.msra.mxu0 0.0
      %2752 = vmatpush.msra.mxu0 0.0
      %2753 = vmatpush.msra.mxu0 0.0
      %2754 = vmatpush.msra.mxu0 0.0
      %2755 = vmatpush.msra.mxu0 0.0
      %2756 = vmatpush.msra.mxu0 %v654
      %2757 = vmatmul.f32.gmra.mxu0 %v2739
      %v2758 = vpop.f32.mrf.mxu0
      %v2759 = vadd.f32 0.0, %v2758
      %2760 = vdwg.mxu0
      %v2762 = vsel %vm1302, %v2069, 0
      %2764 = vmatpush.msra.mxu0 0.0
      %2765 = vmatpush.msra.mxu0 0.0
      %2766 = vmatpush.msra.mxu0 0.0
      %2767 = vmatpush.msra.mxu0 0.0
      %2768 = vmatpush.msra.mxu0 0.0
      %2769 = vmatpush.msra.mxu0 0.0
      %2770 = vmatpush.msra.mxu0 0.0
      %2771 = vmatpush.msra.mxu0 0.0
      %2772 = vmatpush.msra.mxu0 0.0
      %2773 = vmatpush.msra.mxu0 0.0
      %2774 = vmatpush.msra.mxu0 0.0
      %2775 = vmatpush.msra.mxu0 0.0
      %2776 = vmatpush.msra.mxu0 0.0
      %2777 = vmatpush.msra.mxu0 0.0
      %2778 = vmatpush.msra.mxu0 0.0
      %2779 = vmatpush.msra.mxu0 %v657
      %2780 = vmatmul.f32.gmra.mxu0 %v2762
      %v2781 = vpop.f32.mrf.mxu0
      %v2782 = vadd.f32 0.0, %v2781
      %2783 = vdwg.mxu0
      %v2785 = vsel %vm1302, %v2070, 0
      %2787 = vmatpush.msra.mxu0 0.0
      %2788 = vmatpush.msra.mxu0 0.0
      %2789 = vmatpush.msra.mxu0 0.0
      %2790 = vmatpush.msra.mxu0 0.0
      %2791 = vmatpush.msra.mxu0 0.0
      %2792 = vmatpush.msra.mxu0 0.0
      %2793 = vmatpush.msra.mxu0 0.0
      %2794 = vmatpush.msra.mxu0 0.0
      %2795 = vmatpush.msra.mxu0 0.0
      %2796 = vmatpush.msra.mxu0 0.0
      %2797 = vmatpush.msra.mxu0 0.0
      %2798 = vmatpush.msra.mxu0 0.0
      %2799 = vmatpush.msra.mxu0 0.0
      %2800 = vmatpush.msra.mxu0 0.0
      %2801 = vmatpush.msra.mxu0 0.0
      %2802 = vmatpush.msra.mxu0 %v660
      %2803 = vmatmul.f32.gmra.mxu0 %v2785
      %v2804 = vpop.f32.mrf.mxu0
      %v2805 = vadd.f32 0.0, %v2804
      %2806 = vdwg.mxu0
      %2807 = vst.msk [vmem:[%s172] sm:$0xff] %vm226, %v2092
      %2808 = vst.msk [vmem:[%s172 + $0x8] sm:$0xff] %vm226, %v2115
      %2809 = vst.msk [vmem:[%s172 + $0x10] sm:$0xff] %vm226, %v2138
      %2810 = vst.msk [vmem:[%s172 + $0x18] sm:$0xff] %vm226, %v2161
      %2811 = vst.msk [vmem:[%s172 + $0x20] sm:$0xff] %vm226, %v2184
      %2812 = vst.msk [vmem:[%s172 + $0x28] sm:$0xff] %vm226, %v2207
      %2813 = vst.msk [vmem:[%s172 + $0x30] sm:$0xff] %vm226, %v2230
      %2814 = vst.msk [vmem:[%s172 + $0x38] sm:$0xff] %vm226, %v2253
      %2815 = vst.msk [vmem:[%s172 + $0x40] sm:$0xff] %vm226, %v2276
      %2816 = vst.msk [vmem:[%s172 + $0x48] sm:$0xff] %vm226, %v2299
      %2817 = vst.msk [vmem:[%s172 + $0x50] sm:$0xff] %vm226, %v2322
      %2818 = vst.msk [vmem:[%s172 + $0x58] sm:$0xff] %vm226, %v2345
      %2819 = vst.msk [vmem:[%s172 + $0x60] sm:$0xff] %vm226, %v2368
      %2820 = vst.msk [vmem:[%s172 + $0x68] sm:$0xff] %vm226, %v2391
      %2821 = vst.msk [vmem:[%s172 + $0x70] sm:$0xff] %vm226, %v2414
      %2822 = vst.msk [vmem:[%s172 + $0x78] sm:$0xff] %vm226, %v2437
      %2823 = vst.msk [vmem:[%s172 + $0x80] sm:$0xff] %vm226, %v2460
      %2824 = vst.msk [vmem:[%s172 + $0x88] sm:$0xff] %vm226, %v2483
      %2825 = vst.msk [vmem:[%s172 + $0x90] sm:$0xff] %vm226, %v2506
      %2826 = vst.msk [vmem:[%s172 + $0x98] sm:$0xff] %vm226, %v2529
      %2827 = vst.msk [vmem:[%s172 + $0xa0] sm:$0xff] %vm226, %v2552
      %2828 = vst.msk [vmem:[%s172 + $0xa8] sm:$0xff] %vm226, %v2575
      %2829 = vst.msk [vmem:[%s172 + $0xb0] sm:$0xff] %vm226, %v2598
      %2830 = vst.msk [vmem:[%s172 + $0xb8] sm:$0xff] %vm226, %v2621
      %2831 = vst.msk [vmem:[%s172 + $0xc0] sm:$0xff] %vm226, %v2644
      %2832 = vst.msk [vmem:[%s172 + $0xc8] sm:$0xff] %vm226, %v2667
      %2833 = vst.msk [vmem:[%s172 + $0xd0] sm:$0xff] %vm226, %v2690
      %2834 = vst.msk [vmem:[%s172 + $0xd8] sm:$0xff] %vm226, %v2713
      %2835 = vst.msk [vmem:[%s172 + $0xe0] sm:$0xff] %vm226, %v2736
      %2836 = vst.msk [vmem:[%s172 + $0xe8] sm:$0xff] %vm226, %v2759
      %2837 = vst.msk [vmem:[%s172 + $0xf0] sm:$0xff] %vm226, %v2782
      %2838 = vst.msk [vmem:[%s172 + $0xf8] sm:$0xff] %vm226, %v2805
      %s2839 = smul.u32 32, %s14
      %p2840 = scmp.lt.s32.totalorder %s2839, 63
      %s2841 = scalar_select %p2840, %s2839, 63
      %s2842 = smul.addr %s2841, 8
      %s2843 = scalar_lea.vmem %s3, %s2842
      // Predicated region
      $region33: #{tpu_custom_call.1} parent=31 // pred_check
        %p2844 = pneg %p100
      $region34: #{tpu_custom_call.1} parent=31 // pred_check_branch
        %2846 = sbr.rel (%p2844) target = $region36
      $region35: #{tpu_custom_call.1} parent=31 // pred_region
        %s2847 = smul.u32 32, %s14
      $region36: #{tpu_custom_call.1} parent=31 // pred_fallthru
        _
    $region32: #{tpu_custom_call.1} parent=5 // pred_fallthru
      _
    %p2848 = scmp.le.s32.totalorder 2, %s9
    // Predicated region
    $region37: #{tpu_custom_call.1} parent=5 // pred_check
      %p2849 = pneg %p2848
    $region38: #{tpu_custom_call.1} parent=5 // pred_check_branch
      %2851 = sbr.rel (%p2849) target = $region40
    $region39: #{tpu_custom_call.1} parent=5 // pred_region
      %s2852 = ssub.s32 %s9, 2
      // Predicated region
      $region41: #{tpu_custom_call.1} parent=39 // pred_check
        %p2853 = pneg %p106
      $region42: #{tpu_custom_call.1} parent=39 // pred_check_branch
        %2855 = sbr.rel (%p2853) target = $region44
      $region43: #{tpu_custom_call.1} parent=39 // pred_region
        %s2856 = smul.u32 32, %s15
        %p2857 = scmp.lt.s32.totalorder %s2856, 63
        %s2858 = scalar_select %p2857, %s2856, 63
        %s2859 = smul.addr %s2858, 8
        %s2860 = scalar_lea.vmem %s3, %s2859
      $region44: #{tpu_custom_call.1} parent=39 // pred_fallthru
        _
    $region40: #{tpu_custom_call.1} parent=5 // pred_fallthru
      _
  $region6: #{tpu_custom_call.1} parent=0 // loop_footer
    %s13 = sadd.s32 1, %s9
  $region7: #{tpu_custom_call.1} parent=0 // loop_footer_branch
    %8 = sbr.rel target = $region3
  $region8: #{tpu_custom_call.1} parent=0 // loop_exit
    _

</llo_original>
